<compile_context>
chip_gen: v7x
topology: tpu7x:2x2x1
jax: 0.10.0
libtpu: 0.0.40
codegen_flags: <defaults>
</compile_context>

<pallas_src>
import functools

import jax
import jax.numpy as jnp
import numpy as np
from jax.experimental import pallas as pl
from jax.experimental.pallas import tpu as pltpu


# ----------------------------- small helpers -----------------------------

def _round_up(x, m):
    return -(-x // m) * m


def _pack_rows(blocks, ncols):
    """Vertically stack (name, (h, ncols) array) blocks, padding each block to a
    multiple of 8 rows (sublane aligned).  Returns packed array + {name: (off, h)}."""
    layout, rows, off = {}, [], 0
    for name, arr in blocks:
        arr = jnp.asarray(arr, jnp.float32).reshape(-1, ncols)
        h = int(arr.shape[0])
        layout[name] = (off, h)
        hp = _round_up(h, 8)
        if hp > h:
            arr = jnp.pad(arr, ((0, hp - h), (0, 0)))
        rows.append(arr)
        off += hp
    return jnp.concatenate(rows, axis=0), layout


# ------------------------------- the kernel -------------------------------

def make_kernel(T, wtl, w2l, cl, g_rows):
    """Lane-dense layout: features on sublanes, positions on lanes.
    Linears are applied as Y = W @ X with W in torch (out, in) orientation."""
    n_sa = 16 + 2 * T       # stacked [selector hidden ; adaptive-weighting hidden] rows
    n_ctx = 16 + 3 * T      # + context-encoder hidden rows

    def kernel(x_ref, wT_ref, w2_ref, wsa_ref, wif_ref, c_ref, out_ref):
        f32 = jnp.float32
        dot = lambda a, b: jnp.dot(a, b, preferred_element_type=f32)
        relu = lambda v: jnp.maximum(v, 0.0)

        def c(name):                       # (h, 1) constants; lane-splat at point of use
            o, h = cl[name]
            return c_ref[o:o + h, :]

        def wT(name):                      # weights with T input features
            o, h = wtl[name]
            return wT_ref[o:o + h, :]

        def w2(name):                      # weights with 2T input features
            o, h = w2l[name]
            return w2_ref[o:o + h, :]

        def rowsum(v):                     # unrolled sublane reduction (VPU adds)
            s = v[0:1, :]
            for i in range(1, v.shape[0]):
                s = s + v[i:i + 1, :]
            return s

        def layernorm(v, gname, bname):
            mu = rowsum(v) * (1.0 / T)
            d = v - mu
            var = rowsum(d * d) * (1.0 / T)
            return d * jax.lax.rsqrt(var + 1e-5) * c(gname) + c(bname)

        G = x_ref[0:T, :].astype(f32)              # (T, n)  gpcm thresholds
        th = x_ref[T:T + 1, :].astype(f32)         # (1, n)  theta
        al = x_ref[T + 1:T + 2, :].astype(f32)     # (1, n)  alpha

        # One sublane splat of theta/alpha feeds all three context MLP pre-activations.
        ctx = c("ctx_th") * th + c("ctx_al") * al + c("ctx_b")     # (16+3T, n)

        # Single fused MXU matmul for every weight that multiplies gpcm.
        GP = dot(wT_ref[0:g_rows, :], G)

        def gp(name):
            o, h = wtl[name]
            return GP[o:o + h, :]

        # ---- mechanism selector + adaptive weighting: one block-diag matmul ----
        sel_aw = relu(gp("ws1sa") + ctx[0:n_sa, :])                # (16+2T, n)
        sa = dot(wsa_ref[...], sel_aw) + c("b_sa")                 # rows 0:3 logits, 8:8+T aw
        l0, l1, l2 = sa[0:1, :], sa[1:2, :], sa[2:3, :]
        m = jnp.maximum(jnp.maximum(l0, l1), l2)
        e0, e1, e2 = jnp.exp(l0 - m), jnp.exp(l1 - m), jnp.exp(l2 - m)
        s = e0 + e1 + e2
        r = pl.reciprocal(s, approx=True)
        r = r * (2.0 - s * r)                      # one Newton step -> full f32 accuracy
        aw = jax.nn.sigmoid(sa[8:8 + T, :])        # (T, n) adaptive weights

        # ---- hierarchical coupler (tau folded into b_ref) ----
        refinement = jnp.tanh(gp("wr_g") + c("b_ref"))
        hier = G + aw * (c("ref_w") * refinement + c("ref_b"))

        # ---- attention coupler (length-1 attention == out_proj(V(value)); FFN+Wi folded) ----
        g1 = layernorm(c("g_att") + G, "ln1_g", "ln1_b")           # g_att precomputed on host
        c1 = layernorm(gp("wvo2") + c("b_catt"), "ln2_g", "ln2_b") # (Wo2@Wv2)G + folded bias+tau
        A = dot(wT("w_g1s"), g1)                                   # [Wf1a@g1 ; Wi_g@g1]
        Bm = dot(wT("w_c1s"), c1)                                  # [Wf2a@c1 ; Wi_c@c1]
        h_f1 = relu(A[0:2 * T, :] + c("bf1a"))
        h_f2 = relu(Bm[0:2 * T, :] + c("bf2a"))
        hf = jnp.concatenate([h_f1, h_f2], axis=0)                 # (4T, n)
        attn = jnp.tanh(A[2 * T:3 * T, :] + Bm[2 * T:3 * T, :]
                        + dot(wif_ref[...], hf) + c("bi_f"))

        # ---- neural coupler (Wc2 precomposed into Wn1_ce@Wc2; bc2/tau folded into b_n1) ----
        h_ce = relu(ctx[n_sa:n_ctx, :])                            # (T, n)
        h1 = relu(gp("wn1_g") + c("b_n1") + dot(wT("wn1ce_c2"), h_ce))
        h2 = relu(dot(w2("wn2"), h1) + c("bn2"))
        io = jnp.tanh(dot(w2("wn3"), h2) + c("bn3"))
        neur = c("rw") * G + c("omrw") * io

        # ---- adaptive mixture (softmax applied through the shared reciprocal) ----
        out_ref[...] = ((e0 * hier + e1 * attn + e2 * neur) * r).astype(out_ref.dtype)

    return kernel


# ----------------------- host-side folding & packing -----------------------

def pack_params(tp, coral_taus, T):
    """Fold all tau-only math into biases, compose V/out-proj, FFN-out/integration and
    context-encoder-out weights, and pack everything into 5 constant operands."""
    f32 = lambda a: jnp.asarray(a, jnp.float32)
    tau = f32(coral_taus).reshape(T)

    # --- tau-only math folded into biases ---
    Ws1 = f32(tp["Ws1"])
    Ws1_ctx, Ws1_g, Ws1_tau = Ws1[:, :2], Ws1[:, 2:2 + T], Ws1[:, 2 + T:]
    b_sel = f32(tp["bs1"]) + Ws1_tau @ tau

    Wr = f32(tp["Wr"])
    Wr_g, Wr_tau = Wr[:, :T], Wr[:, T:]
    b_ref = f32(tp["br"]) + Wr_tau @ tau

    Wv2, bv2, Wo2, bo2 = f32(tp["Wv2"]), f32(tp["bv2"]), f32(tp["Wo2"]), f32(tp["bo2"])
    Wvo2 = Wo2 @ Wv2                                   # composed V / out_proj
    b_catt = Wo2 @ bv2 + bo2 + tau                     # includes the (+ tau) residual add

    Wv1, bv1, Wo1, bo1 = f32(tp["Wv1"]), f32(tp["bv1"]), f32(tp["Wo1"]), f32(tp["bo1"])
    g_att = Wo1 @ (Wv1 @ tau + bv1) + bo1              # constant per position

    # --- neural coupler: fold context-encoder output layer into Wn1_ce ---
    Wn1 = f32(tp["Wn1"])
    Wn1_g, Wn1_tau, Wn1_ce = Wn1[:, :T], Wn1[:, T:2 * T], Wn1[:, 2 * T:]
    Wc2, bc2 = f32(tp["Wc2"]), f32(tp["bc2"])
    Wn1ce_c2 = Wn1_ce @ Wc2                            # (2T, T)
    b_n1 = f32(tp["bn1"]) + Wn1_tau @ tau + Wn1_ce @ bc2

    # --- attention coupler: fold FFN second layers + integration layer ---
    Wi = f32(tp["Wi"])
    Wi_g, Wi_c = Wi[:, :T], Wi[:, T:]
    Wf1a, bf1a = f32(tp["Wf1a"]), f32(tp["bf1a"])
    Wf1b, bf1b = f32(tp["Wf1b"]), f32(tp["bf1b"])
    Wf2a, bf2a = f32(tp["Wf2a"]), f32(tp["bf2a"])
    Wf2b, bf2b = f32(tp["Wf2b"]), f32(tp["bf2b"])
    wif = jnp.concatenate([Wi_g @ Wf1b, Wi_c @ Wf2b], axis=1)      # (T, 4T)
    bi_f = f32(tp["bi"]) + Wi_g @ bf1b + Wi_c @ bf2b

    Wa1, ba1 = f32(tp["Wa1"]), f32(tp["ba1"])
    Wc1, bc1 = f32(tp["Wc1"]), f32(tp["bc1"])
    rw = f32(tp["rw"]).reshape(1)

    # --- wT pack: all weights with T input features (torch (out,in); Y = W @ X) ---
    wT, wtl = _pack_rows([
        # zero rows after Ws1_g make GP[0:16+2T] align with the stacked context
        # pre-activation, so the selector/adaptive-weight hidden needs no in-kernel concat.
        ("ws1sa", jnp.concatenate([Ws1_g, jnp.zeros((2 * T, T), jnp.float32)], axis=0)),
        ("wr_g", Wr_g), ("wvo2", Wvo2), ("wn1_g", Wn1_g),
        ("w_g1s", jnp.concatenate([Wf1a, Wi_g], axis=0)),
        ("w_c1s", jnp.concatenate([Wf2a, Wi_c], axis=0)),
        ("wn1ce_c2", Wn1ce_c2)], T)
    g_rows = wtl["w_g1s"][0]      # rows [0, g_rows) form the single fused gpcm matmul

    # --- w2 pack: weights with 2T input features ---
    w2, w2l = _pack_rows([("wn2", f32(tp["Wn2"])), ("wn3", f32(tp["Wn3"]))], 2 * T)

    # --- block-diagonal (Ws2 ⊕ Wa2); selector rows padded to 8 so aw stays sublane-aligned ---
    Ws2, bs2 = f32(tp["Ws2"]), f32(tp["bs2"])
    Wa2, ba2 = f32(tp["Wa2"]), f32(tp["ba2"])
    wsa = jnp.zeros((8 + T, 16 + 2 * T), jnp.float32)
    wsa = wsa.at[0:3, 0:16].set(Ws2)
    wsa = wsa.at[8:8 + T, 16:16 + 2 * T].set(Wa2)
    b_sa = jnp.zeros((8 + T,), jnp.float32).at[0:3].set(bs2).at[8:8 + T].set(ba2)

    # --- lane-narrow (h, 1) constants; splat happens once at the point of use ---
    cblocks = [
        ("ctx_th", jnp.concatenate([Ws1_ctx[:, 0], Wa1[:, 0], Wc1[:, 0]])),
        ("ctx_al", jnp.concatenate([Ws1_ctx[:, 1], Wa1[:, 1], Wc1[:, 1]])),
        ("ctx_b",  jnp.concatenate([b_sel, ba1, bc1])),
        ("b_sa", b_sa),
        ("b_ref", b_ref), ("ref_w", tp["ref_w"]), ("ref_b", tp["ref_b"]),
        ("g_att", g_att), ("b_catt", b_catt),
        ("ln1_g", tp["ln1_g"]), ("ln1_b", tp["ln1_b"]),
        ("ln2_g", tp["ln2_g"]), ("ln2_b", tp["ln2_b"]),
        ("bf1a", bf1a), ("bf2a", bf2a), ("bi_f", bi_f),
        ("b_n1", b_n1), ("bn2", tp["bn2"]), ("bn3", tp["bn3"]),
        ("rw", rw), ("omrw", 1.0 - rw),
    ]
    C, cl = _pack_rows(cblocks, 1)

    return dict(wT=wT, w2=w2, wsa=wsa, wif=wif, C=C,
                wT_layout=wtl, w2_layout=w2l, c_layout=cl, g_rows=g_rows)


# --------------------------------- wrapper ---------------------------------

@functools.partial(jax.jit, static_argnames=("tn", "io_dtype"))
def adaptive_threshold_coupler(gpcm_betas, coral_taus, theta, alpha, tp, *,
                               tn=1024, io_dtype=jnp.float32):
    """Pallas forward pass.  Returns unified_thresholds of shape (B, S, T)."""
    B, S, T = gpcm_betas.shape
    N = B * S
    if alpha is None:
        alpha = jnp.ones_like(theta)

    # Lane tile: multiple of 128; don't over-pad tiny inputs; cap the tile so the single
    # 'parallel' grid axis has >= 2 steps when possible (v7x: two TensorCores).
    n128 = _round_up(N, 128)
    tile = _round_up(max(128, min(int(tn), n128)), 128)
    if n128 >= 256:
        tile = min(tile, _round_up(-(-N // 2), 128))
    n_pad = _round_up(N, tile)

    # Data pack (T+2, Npad): rows = [gpcm features; theta; alpha], cols = positions.
    # Zero-padded columns stay finite through LN / softmax.  Under jit the transpose /
    # concat / pad fuse with surrounding XLA ops; io_dtype=bfloat16 halves streamed bytes
    # on v6e/v7x while all in-kernel math stays f32 (keep f32 on v5e).
    g = gpcm_betas.reshape(N, T).T
    x = jnp.concatenate([g, theta.reshape(1, N), alpha.reshape(1, N)], axis=0)
    x = jnp.pad(x.astype(io_dtype), ((0, 0), (0, n_pad - N)))

    packs = pack_params(tp, coral_taus, T)
    kernel = make_kernel(T, packs["wT_layout"], packs["w2_layout"],
                         packs["c_layout"], packs["g_rows"])

    full = lambda a: pl.BlockSpec(a.shape, lambda i: (0, 0))
    out = pl.pallas_call(
        kernel,
        out_shape=jax.ShapeDtypeStruct((T, n_pad), io_dtype),
        grid=(n_pad // tile,),
        in_specs=[
            pl.BlockSpec((T + 2, tile), lambda i: (0, i)),
            full(packs["wT"]), full(packs["w2"]),
            full(packs["wsa"]), full(packs["wif"]), full(packs["C"]),
        ],
        out_specs=pl.BlockSpec((T, tile), lambda i: (0, i)),
        compiler_params=pltpu.CompilerParams(dimension_semantics=("parallel",)),
    )(x, packs["wT"], packs["w2"], packs["wsa"], packs["wif"], packs["C"])
    return out[:, :N].T.reshape(B, S, T)


# ------------------------ deterministic parameter init ------------------------

def init_torch_params(key, T):
    """Synthetic deterministic init using the torch module's weight shapes (out, in)."""
    ki = iter(jax.random.split(key, 32))

    def kaiming(out_f, in_f):
        return jax.random.normal(next(ki), (out_f, in_f), jnp.float32) * np.sqrt(2.0 / in_f)

    z = lambda n: jnp.zeros((n,), jnp.float32)
    o = lambda n: jnp.ones((n,), jnp.float32)

    tp = {}
    # mechanism selector: Linear(2+2T,16), Linear(16,3)
    tp["Ws1"], tp["bs1"] = kaiming(16, 2 + 2 * T), z(16)
    tp["Ws2"], tp["bs2"] = kaiming(3, 16), z(3)
    # hierarchical coupler
    tp["ref_w"] = 1.0 + 0.1 * jax.random.normal(next(ki), (T,), jnp.float32)
    tp["ref_b"] = z(T)
    tp["Wa1"], tp["ba1"] = kaiming(2 * T, 2), z(2 * T)
    tp["Wa2"], tp["ba2"] = kaiming(T, 2 * T), z(T)
    tp["Wr"], tp["br"] = kaiming(T, 2 * T), z(T)
    # attention coupler (only V / out_proj of each MHA affect the output)
    tp["Wv1"], tp["bv1"] = kaiming(T, T), z(T)
    tp["Wo1"], tp["bo1"] = kaiming(T, T), z(T)
    tp["Wv2"], tp["bv2"] = kaiming(T, T), z(T)
    tp["Wo2"], tp["bo2"] = kaiming(T, T), z(T)
    tp["ln1_g"], tp["ln1_b"] = o(T), z(T)
    tp["ln2_g"], tp["ln2_b"] = o(T), z(T)
    tp["Wf1a"], tp["bf1a"] = kaiming(2 * T, T), z(2 * T)
    tp["Wf1b"], tp["bf1b"] = kaiming(T, 2 * T), z(T)
    tp["Wf2a"], tp["bf2a"] = kaiming(2 * T, T), z(2 * T)
    tp["Wf2b"], tp["bf2b"] = kaiming(T, 2 * T), z(T)
    tp["Wi"], tp["bi"] = kaiming(T, 2 * T), z(T)
    # neural coupler (hidden_dim = 2T, hidden_dim//2 = T)
    tp["Wc1"], tp["bc1"] = kaiming(T, 2), z(T)
    tp["Wc2"], tp["bc2"] = kaiming(T, T), z(T)
    tp["Wn1"], tp["bn1"] = kaiming(2 * T, 3 * T), z(2 * T)
    tp["Wn2"], tp["bn2"] = kaiming(2 * T, 2 * T), z(2 * T)
    tp["Wn3"], tp["bn3"] = kaiming(T, 2 * T), z(T)
    tp["rw"] = jnp.float32(0.5)
    return tp


# ----------------------------- pure-JAX reference -----------------------------

def _ln_ref(x, g, b, eps=1e-5):
    mu = jnp.mean(x, axis=-1, keepdims=True)
    var = jnp.mean((x - mu) ** 2, axis=-1, keepdims=True)
    return (x - mu) * jax.lax.rsqrt(var + eps) * g + b


def reference_forward(gpcm, coral_taus, theta, alpha, tp):
    B, S, T = gpcm.shape
    lin = lambda x, W, bb: x @ W.T + bb
    tau_e = jnp.broadcast_to(coral_taus[None, None, :], (B, S, T))
    ctxt = jnp.stack([theta, alpha], -1)

    sel_in = jnp.concatenate([theta[..., None], alpha[..., None], gpcm, tau_e], -1)
    mw = jax.nn.softmax(lin(jax.nn.relu(lin(sel_in, tp["Ws1"], tp["bs1"])),
                            tp["Ws2"], tp["bs2"]), -1)

    comb = jnp.concatenate([gpcm, tau_e], -1)
    refinement = jnp.tanh(lin(comb, tp["Wr"], tp["br"]))
    scaled = tp["ref_w"] * refinement + tp["ref_b"]
    aw = jax.nn.sigmoid(lin(jax.nn.relu(lin(ctxt, tp["Wa1"], tp["ba1"])), tp["Wa2"], tp["ba2"]))
    hier = gpcm + aw * scaled

    g_att = lin(lin(tau_e, tp["Wv1"], tp["bv1"]), tp["Wo1"], tp["bo1"])
    g1 = _ln_ref(g_att + gpcm, tp["ln1_g"], tp["ln1_b"])
    g2 = g1 + lin(jax.nn.relu(lin(g1, tp["Wf1a"], tp["bf1a"])), tp["Wf1b"], tp["bf1b"])
    c_att = lin(lin(gpcm, tp["Wv2"], tp["bv2"]), tp["Wo2"], tp["bo2"])
    c1 = _ln_ref(c_att + tau_e, tp["ln2_g"], tp["ln2_b"])
    c2 = c1 + lin(jax.nn.relu(lin(c1, tp["Wf2a"], tp["bf2a"])), tp["Wf2b"], tp["bf2b"])
    attn = jnp.tanh(lin(jnp.concatenate([g2, c2], -1), tp["Wi"], tp["bi"]))

    ce = lin(jax.nn.relu(lin(ctxt, tp["Wc1"], tp["bc1"])), tp["Wc2"], tp["bc2"])
    ii = jnp.concatenate([gpcm, tau_e, ce], -1)
    h1 = jax.nn.relu(lin(ii, tp["Wn1"], tp["bn1"]))
    h2 = jax.nn.relu(lin(h1, tp["Wn2"], tp["bn2"]))
    io = jnp.tanh(lin(h2, tp["Wn3"], tp["bn3"]))
    neur = tp["rw"] * gpcm + (1.0 - tp["rw"]) * io

    return mw[..., 0:1] * hier + mw[..., 1:2] * attn + mw[..., 2:3] * neur


# ------------------------------------ main ------------------------------------

if __name__ == "__main__":
    B, S, T = 2, 8, 4   # batch=2, seq=8, n_thresholds=4
    key = jax.random.PRNGKey(0)
    k1, k2, k3, k4, kp = jax.random.split(key, 5)
    gpcm_betas = jax.random.normal(k1, (B, S, T), jnp.float32)
    coral_taus = jax.random.normal(k2, (T,), jnp.float32)
    theta = jax.random.normal(k3, (B, S), jnp.float32)
    alpha = jnp.abs(jax.random.normal(k4, (B, S), jnp.float32)) + 0.5

    tp = init_torch_params(kp, T)

    # f32 streaming (default; required for the tight tolerance and for v5e).
    out = adaptive_threshold_coupler(gpcm_betas, coral_taus, theta, alpha, tp, tn=1024)
    out = jax.block_until_ready(out)
    ref = reference_forward(gpcm_betas, coral_taus, theta, alpha, tp)
    np.testing.assert_allclose(np.asarray(out), np.asarray(ref), atol=1e-4, rtol=1e-4)

    # bf16-streamed I/O path (v6e/v7x): inputs/output bf16, all in-kernel math stays f32.
    out_bf = adaptive_threshold_coupler(gpcm_betas, coral_taus, theta, alpha, tp,
                                        tn=1024, io_dtype=jnp.bfloat16)
    out_bf = jax.block_until_ready(out_bf)
    q = lambda a: a.astype(jnp.bfloat16).astype(jnp.float32)
    ref_bf = reference_forward(q(gpcm_betas), coral_taus, q(theta), q(alpha), tp)
    np.testing.assert_allclose(np.asarray(out_bf.astype(jnp.float32)), np.asarray(ref_bf),
                               atol=2e-2, rtol=2e-2)

    print("KERNEL_OK")
</pallas_src>

<mosaic_0001>
module attributes {stable_mosaic.version = 11 : i64} {
  func.func @kernel(%arg0: i32, %arg1: memref<6x128xf32, #tpu.memory_space<vmem>>, %arg2: memref<88x4xf32, #tpu.memory_space<vmem>>, %arg3: memref<16x8xf32, #tpu.memory_space<vmem>>, %arg4: memref<12x24xf32, #tpu.memory_space<vmem>>, %arg5: memref<4x16xf32, #tpu.memory_space<vmem>>, %arg6: memref<248x1xf32, #tpu.memory_space<vmem>>, %arg7: memref<4x128xf32, #tpu.memory_space<vmem>>) attributes {dimension_semantics = [#tpu.dimension_semantics<parallel>], iteration_bounds = array<i64: 1>, scalar_prefetch = 0 : i64, scratch_operands = 0 : i64, tpu.core_type = #tpu.core_type<tc>, window_params = [{transform_indices = @transform_0, window_bounds = array<i64: 6, 128>}, {pipeline_mode = #tpu.pipeline_mode<synchronous>, transform_indices = @transform_1, window_bounds = array<i64: 88, 4>}, {pipeline_mode = #tpu.pipeline_mode<synchronous>, transform_indices = @transform_2, window_bounds = array<i64: 16, 8>}, {pipeline_mode = #tpu.pipeline_mode<synchronous>, transform_indices = @transform_3, window_bounds = array<i64: 12, 24>}, {pipeline_mode = #tpu.pipeline_mode<synchronous>, transform_indices = @transform_4, window_bounds = array<i64: 4, 16>}, {pipeline_mode = #tpu.pipeline_mode<synchronous>, transform_indices = @transform_5, window_bounds = array<i64: 248, 1>}, {transform_indices = @transform_6, window_bounds = array<i64: 4, 128>}]} {
    %c0 = arith.constant 0 : index
    %c0_0 = arith.constant 0 : index
    %0 = vector.load %arg1[%c0, %c0_0] : memref<6x128xf32, #tpu.memory_space<vmem>>, vector<4x128xf32>
    %c4 = arith.constant 4 : index
    %c0_1 = arith.constant 0 : index
    %1 = vector.load %arg1[%c4, %c0_1] : memref<6x128xf32, #tpu.memory_space<vmem>>, vector<1x128xf32>
    %c5 = arith.constant 5 : index
    %c0_2 = arith.constant 0 : index
    %2 = vector.load %arg1[%c5, %c0_2] : memref<6x128xf32, #tpu.memory_space<vmem>>, vector<1x128xf32>
    %c0_3 = arith.constant 0 : index
    %c0_4 = arith.constant 0 : index
    %3 = vector.load %arg6[%c0_3, %c0_4] : memref<248x1xf32, #tpu.memory_space<vmem>>, vector<28x1xf32>
    %4 = vector.broadcast %3 : vector<28x1xf32> to vector<28x128xf32>
    %5 = vector.broadcast %1 : vector<1x128xf32> to vector<28x128xf32>
    %6 = arith.mulf %4, %5 : vector<28x128xf32>
    %c32 = arith.constant 32 : index
    %c0_5 = arith.constant 0 : index
    %7 = vector.load %arg6[%c32, %c0_5] : memref<248x1xf32, #tpu.memory_space<vmem>>, vector<28x1xf32>
    %8 = vector.broadcast %7 : vector<28x1xf32> to vector<28x128xf32>
    %9 = vector.broadcast %2 : vector<1x128xf32> to vector<28x128xf32>
    %10 = arith.mulf %8, %9 : vector<28x128xf32>
    %11 = arith.addf %6, %10 : vector<28x128xf32>
    %c64 = arith.constant 64 : index
    %c0_6 = arith.constant 0 : index
    %12 = vector.load %arg6[%c64, %c0_6] : memref<248x1xf32, #tpu.memory_space<vmem>>, vector<28x1xf32>
    %13 = vector.broadcast %12 : vector<28x1xf32> to vector<28x128xf32>
    %14 = arith.addf %11, %13 : vector<28x128xf32>
    %c0_7 = arith.constant 0 : index
    %c0_8 = arith.constant 0 : index
    %15 = vector.load %arg2[%c0_7, %c0_8] : memref<88x4xf32, #tpu.memory_space<vmem>>, vector<48x4xf32>
    %cst = arith.constant dense<0.000000e+00> : vector<48x128xf32>
    %16 = tpu.matmul %15, %0, %cst {dimension_numbers = #tpu.dot_dimension_numbers<[1], [0], [0], [1], [0, 0, 1, 1], [], []>} : vector<48x4xf32>, vector<4x128xf32>, vector<48x128xf32> -> vector<48x128xf32>
    %17 = vector.extract_strided_slice %16 {offsets = [0, 0], sizes = [24, 128], strides = [1, 1]} : vector<48x128xf32> to vector<24x128xf32>
    %18 = vector.extract_strided_slice %14 {offsets = [0, 0], sizes = [24, 128], strides = [1, 1]} : vector<28x128xf32> to vector<24x128xf32>
    %19 = arith.addf %17, %18 : vector<24x128xf32>
    %cst_9 = arith.constant 0.000000e+00 : f32
    %20 = vector.broadcast %cst_9 : f32 to vector<24x128xf32>
    %21 = arith.maximumf %19, %20 : vector<24x128xf32>
    %c0_10 = arith.constant 0 : index
    %c0_11 = arith.constant 0 : index
    %22 = vector.load %arg4[%c0_10, %c0_11] : memref<12x24xf32, #tpu.memory_space<vmem>>, vector<12x24xf32>
    %cst_12 = arith.constant dense<0.000000e+00> : vector<12x128xf32>
    %23 = tpu.matmul %22, %21, %cst_12 {dimension_numbers = #tpu.dot_dimension_numbers<[1], [0], [0], [1], [0, 0, 1, 1], [], []>} : vector<12x24xf32>, vector<24x128xf32>, vector<12x128xf32> -> vector<12x128xf32>
    %c96 = arith.constant 96 : index
    %c0_13 = arith.constant 0 : index
    %24 = vector.load %arg6[%c96, %c0_13] : memref<248x1xf32, #tpu.memory_space<vmem>>, vector<12x1xf32>
    %25 = vector.broadcast %24 : vector<12x1xf32> to vector<12x128xf32>
    %26 = arith.addf %23, %25 : vector<12x128xf32>
    %27 = vector.extract_strided_slice %26 {offsets = [0, 0], sizes = [1, 128], strides = [1, 1]} : vector<12x128xf32> to vector<1x128xf32>
    %28 = vector.extract_strided_slice %26 {offsets = [1, 0], sizes = [1, 128], strides = [1, 1]} : vector<12x128xf32> to vector<1x128xf32>
    %29 = vector.extract_strided_slice %26 {offsets = [2, 0], sizes = [1, 128], strides = [1, 1]} : vector<12x128xf32> to vector<1x128xf32>
    %30 = arith.maximumf %27, %28 : vector<1x128xf32>
    %31 = arith.maximumf %30, %29 : vector<1x128xf32>
    %32 = arith.subf %27, %31 : vector<1x128xf32>
    %33 = math.exp %32 : vector<1x128xf32>
    %34 = arith.subf %28, %31 : vector<1x128xf32>
    %35 = math.exp %34 : vector<1x128xf32>
    %36 = arith.subf %29, %31 : vector<1x128xf32>
    %37 = math.exp %36 : vector<1x128xf32>
    %38 = arith.addf %33, %35 : vector<1x128xf32>
    %39 = arith.addf %38, %37 : vector<1x128xf32>
    %40 = tpu.reciprocal %39 {approx = true} : vector<1x128xf32> -> vector<1x128xf32>
    %41 = arith.mulf %39, %40 : vector<1x128xf32>
    %cst_14 = arith.constant 2.000000e+00 : f32
    %42 = vector.broadcast %cst_14 : f32 to vector<1x128xf32>
    %43 = arith.subf %42, %41 : vector<1x128xf32>
    %44 = arith.mulf %40, %43 : vector<1x128xf32>
    %45 = vector.extract_strided_slice %26 {offsets = [8, 0], sizes = [4, 128], strides = [1, 1]} : vector<12x128xf32> to vector<4x128xf32>
    %46 = arith.negf %45 : vector<4x128xf32>
    %47 = math.exp %46 : vector<4x128xf32>
    %cst_15 = arith.constant 1.000000e+00 : f32
    %48 = vector.broadcast %cst_15 : f32 to vector<4x128xf32>
    %49 = arith.addf %48, %47 : vector<4x128xf32>
    %50 = arith.divf %48, %49 : vector<4x128xf32>
    %51 = vector.extract_strided_slice %16 {offsets = [24, 0], sizes = [4, 128], strides = [1, 1]} : vector<48x128xf32> to vector<4x128xf32>
    %c112 = arith.constant 112 : index
    %c0_16 = arith.constant 0 : index
    %52 = vector.load %arg6[%c112, %c0_16] : memref<248x1xf32, #tpu.memory_space<vmem>>, vector<4x1xf32>
    %53 = vector.broadcast %52 : vector<4x1xf32> to vector<4x128xf32>
    %54 = arith.addf %51, %53 : vector<4x128xf32>
    %55 = math.tanh %54 : vector<4x128xf32>
    %c120 = arith.constant 120 : index
    %c0_17 = arith.constant 0 : index
    %56 = vector.load %arg6[%c120, %c0_17] : memref<248x1xf32, #tpu.memory_space<vmem>>, vector<4x1xf32>
    %57 = vector.broadcast %56 : vector<4x1xf32> to vector<4x128xf32>
    %58 = arith.mulf %57, %55 : vector<4x128xf32>
    %c128 = arith.constant 128 : index
    %c0_18 = arith.constant 0 : index
    %59 = vector.load %arg6[%c128, %c0_18] : memref<248x1xf32, #tpu.memory_space<vmem>>, vector<4x1xf32>
    %60 = vector.broadcast %59 : vector<4x1xf32> to vector<4x128xf32>
    %61 = arith.addf %58, %60 : vector<4x128xf32>
    %62 = arith.mulf %50, %61 : vector<4x128xf32>
    %63 = arith.addf %0, %62 : vector<4x128xf32>
    %c136 = arith.constant 136 : index
    %c0_19 = arith.constant 0 : index
    %64 = vector.load %arg6[%c136, %c0_19] : memref<248x1xf32, #tpu.memory_space<vmem>>, vector<4x1xf32>
    %65 = vector.broadcast %64 : vector<4x1xf32> to vector<4x128xf32>
    %66 = arith.addf %65, %0 : vector<4x128xf32>
    %67 = vector.extract_strided_slice %66 {offsets = [0, 0], sizes = [1, 128], strides = [1, 1]} : vector<4x128xf32> to vector<1x128xf32>
    %68 = vector.extract_strided_slice %66 {offsets = [1, 0], sizes = [1, 128], strides = [1, 1]} : vector<4x128xf32> to vector<1x128xf32>
    %69 = arith.addf %67, %68 : vector<1x128xf32>
    %70 = vector.extract_strided_slice %66 {offsets = [2, 0], sizes = [1, 128], strides = [1, 1]} : vector<4x128xf32> to vector<1x128xf32>
    %71 = arith.addf %69, %70 : vector<1x128xf32>
    %72 = vector.extract_strided_slice %66 {offsets = [3, 0], sizes = [1, 128], strides = [1, 1]} : vector<4x128xf32> to vector<1x128xf32>
    %73 = arith.addf %71, %72 : vector<1x128xf32>
    %cst_20 = arith.constant 2.500000e-01 : f32
    %74 = vector.broadcast %cst_20 : f32 to vector<1x128xf32>
    %75 = arith.mulf %73, %74 : vector<1x128xf32>
    %76 = vector.broadcast %75 : vector<1x128xf32> to vector<4x128xf32>
    %77 = arith.subf %66, %76 : vector<4x128xf32>
    %78 = arith.mulf %77, %77 : vector<4x128xf32>
    %79 = vector.extract_strided_slice %78 {offsets = [0, 0], sizes = [1, 128], strides = [1, 1]} : vector<4x128xf32> to vector<1x128xf32>
    %80 = vector.extract_strided_slice %78 {offsets = [1, 0], sizes = [1, 128], strides = [1, 1]} : vector<4x128xf32> to vector<1x128xf32>
    %81 = arith.addf %79, %80 : vector<1x128xf32>
    %82 = vector.extract_strided_slice %78 {offsets = [2, 0], sizes = [1, 128], strides = [1, 1]} : vector<4x128xf32> to vector<1x128xf32>
    %83 = arith.addf %81, %82 : vector<1x128xf32>
    %84 = vector.extract_strided_slice %78 {offsets = [3, 0], sizes = [1, 128], strides = [1, 1]} : vector<4x128xf32> to vector<1x128xf32>
    %85 = arith.addf %83, %84 : vector<1x128xf32>
    %cst_21 = arith.constant 2.500000e-01 : f32
    %86 = vector.broadcast %cst_21 : f32 to vector<1x128xf32>
    %87 = arith.mulf %85, %86 : vector<1x128xf32>
    %cst_22 = arith.constant 9.99999974E-6 : f32
    %88 = vector.broadcast %cst_22 : f32 to vector<1x128xf32>
    %89 = arith.addf %87, %88 : vector<1x128xf32>
    %90 = math.rsqrt %89 : vector<1x128xf32>
    %91 = vector.broadcast %90 : vector<1x128xf32> to vector<4x128xf32>
    %92 = arith.mulf %77, %91 : vector<4x128xf32>
    %c152 = arith.constant 152 : index
    %c0_23 = arith.constant 0 : index
    %93 = vector.load %arg6[%c152, %c0_23] : memref<248x1xf32, #tpu.memory_space<vmem>>, vector<4x1xf32>
    %94 = vector.broadcast %93 : vector<4x1xf32> to vector<4x128xf32>
    %95 = arith.mulf %92, %94 : vector<4x128xf32>
    %c160 = arith.constant 160 : index
    %c0_24 = arith.constant 0 : index
    %96 = vector.load %arg6[%c160, %c0_24] : memref<248x1xf32, #tpu.memory_space<vmem>>, vector<4x1xf32>
    %97 = vector.broadcast %96 : vector<4x1xf32> to vector<4x128xf32>
    %98 = arith.addf %95, %97 : vector<4x128xf32>
    %99 = vector.extract_strided_slice %16 {offsets = [32, 0], sizes = [4, 128], strides = [1, 1]} : vector<48x128xf32> to vector<4x128xf32>
    %c144 = arith.constant 144 : index
    %c0_25 = arith.constant 0 : index
    %100 = vector.load %arg6[%c144, %c0_25] : memref<248x1xf32, #tpu.memory_space<vmem>>, vector<4x1xf32>
    %101 = vector.broadcast %100 : vector<4x1xf32> to vector<4x128xf32>
    %102 = arith.addf %99, %101 : vector<4x128xf32>
    %103 = vector.extract_strided_slice %102 {offsets = [0, 0], sizes = [1, 128], strides = [1, 1]} : vector<4x128xf32> to vector<1x128xf32>
    %104 = vector.extract_strided_slice %102 {offsets = [1, 0], sizes = [1, 128], strides = [1, 1]} : vector<4x128xf32> to vector<1x128xf32>
    %105 = arith.addf %103, %104 : vector<1x128xf32>
    %106 = vector.extract_strided_slice %102 {offsets = [2, 0], sizes = [1, 128], strides = [1, 1]} : vector<4x128xf32> to vector<1x128xf32>
    %107 = arith.addf %105, %106 : vector<1x128xf32>
    %108 = vector.extract_strided_slice %102 {offsets = [3, 0], sizes = [1, 128], strides = [1, 1]} : vector<4x128xf32> to vector<1x128xf32>
    %109 = arith.addf %107, %108 : vector<1x128xf32>
    %cst_26 = arith.constant 2.500000e-01 : f32
    %110 = vector.broadcast %cst_26 : f32 to vector<1x128xf32>
    %111 = arith.mulf %109, %110 : vector<1x128xf32>
    %112 = vector.broadcast %111 : vector<1x128xf32> to vector<4x128xf32>
    %113 = arith.subf %102, %112 : vector<4x128xf32>
    %114 = arith.mulf %113, %113 : vector<4x128xf32>
    %115 = vector.extract_strided_slice %114 {offsets = [0, 0], sizes = [1, 128], strides = [1, 1]} : vector<4x128xf32> to vector<1x128xf32>
    %116 = vector.extract_strided_slice %114 {offsets = [1, 0], sizes = [1, 128], strides = [1, 1]} : vector<4x128xf32> to vector<1x128xf32>
    %117 = arith.addf %115, %116 : vector<1x128xf32>
    %118 = vector.extract_strided_slice %114 {offsets = [2, 0], sizes = [1, 128], strides = [1, 1]} : vector<4x128xf32> to vector<1x128xf32>
    %119 = arith.addf %117, %118 : vector<1x128xf32>
    %120 = vector.extract_strided_slice %114 {offsets = [3, 0], sizes = [1, 128], strides = [1, 1]} : vector<4x128xf32> to vector<1x128xf32>
    %121 = arith.addf %119, %120 : vector<1x128xf32>
    %cst_27 = arith.constant 2.500000e-01 : f32
    %122 = vector.broadcast %cst_27 : f32 to vector<1x128xf32>
    %123 = arith.mulf %121, %122 : vector<1x128xf32>
    %cst_28 = arith.constant 9.99999974E-6 : f32
    %124 = vector.broadcast %cst_28 : f32 to vector<1x128xf32>
    %125 = arith.addf %123, %124 : vector<1x128xf32>
    %126 = math.rsqrt %125 : vector<1x128xf32>
    %127 = vector.broadcast %126 : vector<1x128xf32> to vector<4x128xf32>
    %128 = arith.mulf %113, %127 : vector<4x128xf32>
    %c168 = arith.constant 168 : index
    %c0_29 = arith.constant 0 : index
    %129 = vector.load %arg6[%c168, %c0_29] : memref<248x1xf32, #tpu.memory_space<vmem>>, vector<4x1xf32>
    %130 = vector.broadcast %129 : vector<4x1xf32> to vector<4x128xf32>
    %131 = arith.mulf %128, %130 : vector<4x128xf32>
    %c176 = arith.constant 176 : index
    %c0_30 = arith.constant 0 : index
    %132 = vector.load %arg6[%c176, %c0_30] : memref<248x1xf32, #tpu.memory_space<vmem>>, vector<4x1xf32>
    %133 = vector.broadcast %132 : vector<4x1xf32> to vector<4x128xf32>
    %134 = arith.addf %131, %133 : vector<4x128xf32>
    %c48 = arith.constant 48 : index
    %c0_31 = arith.constant 0 : index
    %135 = vector.load %arg2[%c48, %c0_31] : memref<88x4xf32, #tpu.memory_space<vmem>>, vector<12x4xf32>
    %cst_32 = arith.constant dense<0.000000e+00> : vector<12x128xf32>
    %136 = tpu.matmul %135, %98, %cst_32 {dimension_numbers = #tpu.dot_dimension_numbers<[1], [0], [0], [1], [0, 0, 1, 1], [], []>} : vector<12x4xf32>, vector<4x128xf32>, vector<12x128xf32> -> vector<12x128xf32>
    %c64_33 = arith.constant 64 : index
    %c0_34 = arith.constant 0 : index
    %137 = vector.load %arg2[%c64_33, %c0_34] : memref<88x4xf32, #tpu.memory_space<vmem>>, vector<12x4xf32>
    %cst_35 = arith.constant dense<0.000000e+00> : vector<12x128xf32>
    %138 = tpu.matmul %137, %134, %cst_35 {dimension_numbers = #tpu.dot_dimension_numbers<[1], [0], [0], [1], [0, 0, 1, 1], [], []>} : vector<12x4xf32>, vector<4x128xf32>, vector<12x128xf32> -> vector<12x128xf32>
    %139 = vector.extract_strided_slice %136 {offsets = [0, 0], sizes = [8, 128], strides = [1, 1]} : vector<12x128xf32> to vector<8x128xf32>
    %c184 = arith.constant 184 : index
    %c0_36 = arith.constant 0 : index
    %140 = vector.load %arg6[%c184, %c0_36] : memref<248x1xf32, #tpu.memory_space<vmem>>, vector<8x1xf32>
    %141 = vector.broadcast %140 : vector<8x1xf32> to vector<8x128xf32>
    %142 = arith.addf %139, %141 : vector<8x128xf32>
    %cst_37 = arith.constant 0.000000e+00 : f32
    %143 = vector.broadcast %cst_37 : f32 to vector<8x128xf32>
    %144 = arith.maximumf %142, %143 : vector<8x128xf32>
    %145 = vector.extract_strided_slice %138 {offsets = [0, 0], sizes = [8, 128], strides = [1, 1]} : vector<12x128xf32> to vector<8x128xf32>
    %c192 = arith.constant 192 : index
    %c0_38 = arith.constant 0 : index
    %146 = vector.load %arg6[%c192, %c0_38] : memref<248x1xf32, #tpu.memory_space<vmem>>, vector<8x1xf32>
    %147 = vector.broadcast %146 : vector<8x1xf32> to vector<8x128xf32>
    %148 = arith.addf %145, %147 : vector<8x128xf32>
    %cst_39 = arith.constant 0.000000e+00 : f32
    %149 = vector.broadcast %cst_39 : f32 to vector<8x128xf32>
    %150 = arith.maximumf %148, %149 : vector<8x128xf32>
    %151 = tpu.concatenate %144, %150 in 0 : vector<8x128xf32>, vector<8x128xf32> -> vector<16x128xf32>
    %152 = vector.extract_strided_slice %136 {offsets = [8, 0], sizes = [4, 128], strides = [1, 1]} : vector<12x128xf32> to vector<4x128xf32>
    %153 = vector.extract_strided_slice %138 {offsets = [8, 0], sizes = [4, 128], strides = [1, 1]} : vector<12x128xf32> to vector<4x128xf32>
    %154 = arith.addf %152, %153 : vector<4x128xf32>
    %c0_40 = arith.constant 0 : index
    %c0_41 = arith.constant 0 : index
    %155 = vector.load %arg5[%c0_40, %c0_41] : memref<4x16xf32, #tpu.memory_space<vmem>>, vector<4x16xf32>
    %cst_42 = arith.constant dense<0.000000e+00> : vector<4x128xf32>
    %156 = tpu.matmul %155, %151, %cst_42 {dimension_numbers = #tpu.dot_dimension_numbers<[1], [0], [0], [1], [0, 0, 1, 1], [], []>} : vector<4x16xf32>, vector<16x128xf32>, vector<4x128xf32> -> vector<4x128xf32>
    %157 = arith.addf %154, %156 : vector<4x128xf32>
    %c200 = arith.constant 200 : index
    %c0_43 = arith.constant 0 : index
    %158 = vector.load %arg6[%c200, %c0_43] : memref<248x1xf32, #tpu.memory_space<vmem>>, vector<4x1xf32>
    %159 = vector.broadcast %158 : vector<4x1xf32> to vector<4x128xf32>
    %160 = arith.addf %157, %159 : vector<4x128xf32>
    %161 = math.tanh %160 : vector<4x128xf32>
    %162 = vector.extract_strided_slice %14 {offsets = [24, 0], sizes = [4, 128], strides = [1, 1]} : vector<28x128xf32> to vector<4x128xf32>
    %cst_44 = arith.constant 0.000000e+00 : f32
    %163 = vector.broadcast %cst_44 : f32 to vector<4x128xf32>
    %164 = arith.maximumf %162, %163 : vector<4x128xf32>
    %165 = vector.extract_strided_slice %16 {offsets = [40, 0], sizes = [8, 128], strides = [1, 1]} : vector<48x128xf32> to vector<8x128xf32>
    %c208 = arith.constant 208 : index
    %c0_45 = arith.constant 0 : index
    %166 = vector.load %arg6[%c208, %c0_45] : memref<248x1xf32, #tpu.memory_space<vmem>>, vector<8x1xf32>
    %167 = vector.broadcast %166 : vector<8x1xf32> to vector<8x128xf32>
    %168 = arith.addf %165, %167 : vector<8x128xf32>
    %c80 = arith.constant 80 : index
    %c0_46 = arith.constant 0 : index
    %169 = vector.load %arg2[%c80, %c0_46] : memref<88x4xf32, #tpu.memory_space<vmem>>, vector<8x4xf32>
    %cst_47 = arith.constant dense<0.000000e+00> : vector<8x128xf32>
    %170 = tpu.matmul %169, %164, %cst_47 {dimension_numbers = #tpu.dot_dimension_numbers<[1], [0], [0], [1], [0, 0, 1, 1], [], []>} : vector<8x4xf32>, vector<4x128xf32>, vector<8x128xf32> -> vector<8x128xf32>
    %171 = arith.addf %168, %170 : vector<8x128xf32>
    %cst_48 = arith.constant 0.000000e+00 : f32
    %172 = vector.broadcast %cst_48 : f32 to vector<8x128xf32>
    %173 = arith.maximumf %171, %172 : vector<8x128xf32>
    %c0_49 = arith.constant 0 : index
    %c0_50 = arith.constant 0 : index
    %174 = vector.load %arg3[%c0_49, %c0_50] : memref<16x8xf32, #tpu.memory_space<vmem>>, vector<8x8xf32>
    %cst_51 = arith.constant dense<0.000000e+00> : vector<8x128xf32>
    %175 = tpu.matmul %174, %173, %cst_51 {dimension_numbers = #tpu.dot_dimension_numbers<[1], [0], [0], [1], [0, 0, 1, 1], [], []>} : vector<8x8xf32>, vector<8x128xf32>, vector<8x128xf32> -> vector<8x128xf32>
    %c216 = arith.constant 216 : index
    %c0_52 = arith.constant 0 : index
    %176 = vector.load %arg6[%c216, %c0_52] : memref<248x1xf32, #tpu.memory_space<vmem>>, vector<8x1xf32>
    %177 = vector.broadcast %176 : vector<8x1xf32> to vector<8x128xf32>
    %178 = arith.addf %175, %177 : vector<8x128xf32>
    %cst_53 = arith.constant 0.000000e+00 : f32
    %179 = vector.broadcast %cst_53 : f32 to vector<8x128xf32>
    %180 = arith.maximumf %178, %179 : vector<8x128xf32>
    %c8 = arith.constant 8 : index
    %c0_54 = arith.constant 0 : index
    %181 = vector.load %arg3[%c8, %c0_54] : memref<16x8xf32, #tpu.memory_space<vmem>>, vector<4x8xf32>
    %cst_55 = arith.constant dense<0.000000e+00> : vector<4x128xf32>
    %182 = tpu.matmul %181, %180, %cst_55 {dimension_numbers = #tpu.dot_dimension_numbers<[1], [0], [0], [1], [0, 0, 1, 1], [], []>} : vector<4x8xf32>, vector<8x128xf32>, vector<4x128xf32> -> vector<4x128xf32>
    %c224 = arith.constant 224 : index
    %c0_56 = arith.constant 0 : index
    %183 = vector.load %arg6[%c224, %c0_56] : memref<248x1xf32, #tpu.memory_space<vmem>>, vector<4x1xf32>
    %184 = vector.broadcast %183 : vector<4x1xf32> to vector<4x128xf32>
    %185 = arith.addf %182, %184 : vector<4x128xf32>
    %186 = math.tanh %185 : vector<4x128xf32>
    %c232 = arith.constant 232 : index
    %c0_57 = arith.constant 0 : index
    %187 = vector.load %arg6[%c232, %c0_57] : memref<248x1xf32, #tpu.memory_space<vmem>>, vector<1x1xf32>
    %188 = vector.broadcast %187 : vector<1x1xf32> to vector<4x128xf32>
    %189 = arith.mulf %188, %0 : vector<4x128xf32>
    %c240 = arith.constant 240 : index
    %c0_58 = arith.constant 0 : index
    %190 = vector.load %arg6[%c240, %c0_58] : memref<248x1xf32, #tpu.memory_space<vmem>>, vector<1x1xf32>
    %191 = vector.broadcast %190 : vector<1x1xf32> to vector<4x128xf32>
    %192 = arith.mulf %191, %186 : vector<4x128xf32>
    %193 = arith.addf %189, %192 : vector<4x128xf32>
    %194 = vector.broadcast %33 : vector<1x128xf32> to vector<4x128xf32>
    %195 = arith.mulf %194, %63 : vector<4x128xf32>
    %196 = vector.broadcast %35 : vector<1x128xf32> to vector<4x128xf32>
    %197 = arith.mulf %196, %161 : vector<4x128xf32>
    %198 = arith.addf %195, %197 : vector<4x128xf32>
    %199 = vector.broadcast %37 : vector<1x128xf32> to vector<4x128xf32>
    %200 = arith.mulf %199, %193 : vector<4x128xf32>
    %201 = arith.addf %198, %200 : vector<4x128xf32>
    %202 = vector.broadcast %44 : vector<1x128xf32> to vector<4x128xf32>
    %203 = arith.mulf %201, %202 : vector<4x128xf32>
    %c0_59 = arith.constant 0 : index
    %c0_60 = arith.constant 0 : index
    %204 = vector.load %arg7[%c0_59, %c0_60] : memref<4x128xf32, #tpu.memory_space<vmem>>, vector<4x128xf32>
    tpu.vector_store %arg7[%c0_59, %c0_60], %203 {strides = array<i32>} : memref<4x128xf32, #tpu.memory_space<vmem>>, vector<4x128xf32>,
    return
  }
  func.func @transform_0(%arg0: i32) -> (i32, i32) {
    %c0_i32 = arith.constant 0 : i32
    %c0_i32_0 = arith.constant 0 : i32
    return %c0_i32, %arg0 : i32, i32
  }
  func.func @transform_1(%arg0: i32) -> (i32, i32) {
    %c0_i32 = arith.constant 0 : i32
    %c0_i32_0 = arith.constant 0 : i32
    %c0_i32_1 = arith.constant 0 : i32
    return %c0_i32, %c0_i32_0 : i32, i32
  }
  func.func @transform_2(%arg0: i32) -> (i32, i32) {
    %c0_i32 = arith.constant 0 : i32
    %c0_i32_0 = arith.constant 0 : i32
    %c0_i32_1 = arith.constant 0 : i32
    return %c0_i32, %c0_i32_0 : i32, i32
  }
  func.func @transform_3(%arg0: i32) -> (i32, i32) {
    %c0_i32 = arith.constant 0 : i32
    %c0_i32_0 = arith.constant 0 : i32
    %c0_i32_1 = arith.constant 0 : i32
    return %c0_i32, %c0_i32_0 : i32, i32
  }
  func.func @transform_4(%arg0: i32) -> (i32, i32) {
    %c0_i32 = arith.constant 0 : i32
    %c0_i32_0 = arith.constant 0 : i32
    %c0_i32_1 = arith.constant 0 : i32
    return %c0_i32, %c0_i32_0 : i32, i32
  }
  func.func @transform_5(%arg0: i32) -> (i32, i32) {
    %c0_i32 = arith.constant 0 : i32
    %c0_i32_0 = arith.constant 0 : i32
    %c0_i32_1 = arith.constant 0 : i32
    return %c0_i32, %c0_i32_0 : i32, i32
  }
  func.func @transform_6(%arg0: i32) -> (i32, i32) {
    %c0_i32 = arith.constant 0 : i32
    %c0_i32_0 = arith.constant 0 : i32
    return %c0_i32, %arg0 : i32, i32
  }
}

</mosaic_0001>

<llo_original>
// kernel: adaptive_threshold_coupler.1
$region0: #{adaptive_threshold_coupler.1}
  #allocation0 [shape = 'u32[]', space=smem, size = 0x4, offset = 0x4, fixed_abs, tag = 'smem constant byte address 0x4 - core index']
  #allocation1 [shape = 'u32[144,128]{1,0:T(1,128)}', space=vmem, size = 0x12000, scoped, tag = 'internal scratch']
  %s0 = inlined_call_operand.vmem [shape: f32[6,128], index: 0, kind: input, shape index: {}]
  %s1 = inlined_call_operand.vmem [shape: f32[88,4], index: 1, kind: input, shape index: {}]
  %s2 = inlined_call_operand.vmem [shape: f32[16,8], index: 2, kind: input, shape index: {}]
  %s3 = inlined_call_operand.vmem [shape: f32[12,24], index: 3, kind: input, shape index: {}]
  %s4 = inlined_call_operand.vmem [shape: f32[4,16], index: 4, kind: input, shape index: {}]
  %s5 = inlined_call_operand.vmem [shape: f32[248,1], index: 5, kind: input, shape index: {}]
  %s6 = inlined_call_operand.vmem [shape: f32[4,128], index: 6, kind: output, shape index: {}]
  %s7 = sld [smem:[#allocation0]]
  $region34: #{adaptive_threshold_coupler.1} parent=0
    _
  %s9 = ssub.s32 1, %s7
  %s10 = scalar_select 0, %s9, %s7
  // Predicated region
  $region2: #{adaptive_threshold_coupler.1} parent=0 // pred_check
    _
  $region3: #{adaptive_threshold_coupler.1} parent=0 // pred_check_branch
    %12 = sbr.rel (0) target = $region5
  $region4: #{adaptive_threshold_coupler.1} parent=0 // pred_region
    _
  $region5: #{adaptive_threshold_coupler.1} parent=0 // pred_fallthru
    _
  // Predicated region
  $region6: #{adaptive_threshold_coupler.1} parent=0 // pred_check
    _
  $region7: #{adaptive_threshold_coupler.1} parent=0 // pred_check_branch
    %14 = sbr.rel (0) target = $region9
  $region8: #{adaptive_threshold_coupler.1} parent=0 // pred_region
    _
  $region9: #{adaptive_threshold_coupler.1} parent=0 // pred_fallthru
    _
  // Predicated region
  $region10: #{adaptive_threshold_coupler.1} parent=0 // pred_check
    _
  $region11: #{adaptive_threshold_coupler.1} parent=0 // pred_check_branch
    %16 = sbr.rel (0) target = $region13
  $region12: #{adaptive_threshold_coupler.1} parent=0 // pred_region
    _
  $region13: #{adaptive_threshold_coupler.1} parent=0 // pred_fallthru
    _
  // Predicated region
  $region14: #{adaptive_threshold_coupler.1} parent=0 // pred_check
    _
  $region15: #{adaptive_threshold_coupler.1} parent=0 // pred_check_branch
    %18 = sbr.rel (0) target = $region17
  $region16: #{adaptive_threshold_coupler.1} parent=0 // pred_region
    _
  $region17: #{adaptive_threshold_coupler.1} parent=0 // pred_fallthru
    _
  // Predicated region
  $region18: #{adaptive_threshold_coupler.1} parent=0 // pred_check
    _
  $region19: #{adaptive_threshold_coupler.1} parent=0 // pred_check_branch
    %20 = sbr.rel (0) target = $region21
  $region20: #{adaptive_threshold_coupler.1} parent=0 // pred_region
    _
  $region21: #{adaptive_threshold_coupler.1} parent=0 // pred_fallthru
    _
  // Predicated region
  $region22: #{adaptive_threshold_coupler.1} parent=0 // pred_check
    _
  $region23: #{adaptive_threshold_coupler.1} parent=0 // pred_check_branch
    %22 = sbr.rel (0) target = $region25
  $region24: #{adaptive_threshold_coupler.1} parent=0 // pred_region
    _
  $region25: #{adaptive_threshold_coupler.1} parent=0 // pred_fallthru
    _
  %v23 = vld [vmem:[%s0] sm:$0xf]
  %v24 = vld [vmem:[%s0 + $0x4] sm:$0x1]
  %v25 = vld [vmem:[%s0 + $0x5] sm:$0x1]
  %v26 = vld [vmem:[%s5] sm:$0xff]
  %v27 = vld [vmem:[%s5 + $0x8] sm:$0xff]
  %v28 = vld [vmem:[%s5 + $0x10] sm:$0xff]
  %v29 = vld [vmem:[%s5 + $0x18] sm:$0xf]
  %31 = vset.pattern.permute.xlu0 0
  %32 = vperm.xlu0 %31, %v26
  %v33 = vpop.permute.xlu0 %32
  %36 = vset.pattern.permute.xlu0 0
  %37 = vperm.xlu0 %36, %v27
  %v38 = vpop.permute.xlu0 %37
  %41 = vset.pattern.permute.xlu0 0
  %42 = vperm.xlu0 %41, %v28
  %v43 = vpop.permute.xlu0 %42
  %46 = vset.pattern.permute.xlu0 0
  %47 = vperm.xlu0 %46, %v29
  %v48 = vpop.permute.xlu0 %47
  %v50 = vlaneseq
  %v51 = vshrl.u32 %v50, 7
  %v52 = vsub.s32 0, %v51
  %v53 = vrot.slane %v24, %v52
  %v54 = vmul.f32 %v33, %v53
  %v55 = vmul.f32 %v38, %v53
  %v56 = vmul.f32 %v43, %v53
  %v57 = vmul.f32 %v48, %v53
  %v58 = vld [vmem:[%s5 + $0x20] sm:$0xff]
  %v59 = vld [vmem:[%s5 + $0x28] sm:$0xff]
  %v60 = vld [vmem:[%s5 + $0x30] sm:$0xff]
  %v61 = vld [vmem:[%s5 + $0x38] sm:$0xf]
  %63 = vset.pattern.permute.xlu0 0
  %64 = vperm.xlu0 %63, %v58
  %v65 = vpop.permute.xlu0 %64
  %68 = vset.pattern.permute.xlu0 0
  %69 = vperm.xlu0 %68, %v59
  %v70 = vpop.permute.xlu0 %69
  %73 = vset.pattern.permute.xlu0 0
  %74 = vperm.xlu0 %73, %v60
  %v75 = vpop.permute.xlu0 %74
  %78 = vset.pattern.permute.xlu0 0
  %79 = vperm.xlu0 %78, %v61
  %v80 = vpop.permute.xlu0 %79
  %v82 = vlaneseq
  %v83 = vshrl.u32 %v82, 7
  %v84 = vsub.s32 0, %v83
  %v85 = vrot.slane %v25, %v84
  %v86 = vmul.f32 %v65, %v85
  %v87 = vmul.f32 %v70, %v85
  %v88 = vmul.f32 %v75, %v85
  %v89 = vmul.f32 %v80, %v85
  %v90 = vadd.f32 %v54, %v86
  %v91 = vadd.f32 %v55, %v87
  %v92 = vadd.f32 %v56, %v88
  %v93 = vadd.f32 %v57, %v89
  %v94 = vld [vmem:[%s5 + $0x40] sm:$0xff]
  %v95 = vld [vmem:[%s5 + $0x48] sm:$0xff]
  %v96 = vld [vmem:[%s5 + $0x50] sm:$0xff]
  %v97 = vld [vmem:[%s5 + $0x58] sm:$0xf]
  %99 = vset.pattern.permute.xlu0 0
  %100 = vperm.xlu0 %99, %v94
  %v101 = vpop.permute.xlu0 %100
  %104 = vset.pattern.permute.xlu0 0
  %105 = vperm.xlu0 %104, %v95
  %v106 = vpop.permute.xlu0 %105
  %109 = vset.pattern.permute.xlu0 0
  %110 = vperm.xlu0 %109, %v96
  %v111 = vpop.permute.xlu0 %110
  %114 = vset.pattern.permute.xlu0 0
  %115 = vperm.xlu0 %114, %v97
  %v116 = vpop.permute.xlu0 %115
  %v118 = vadd.f32 %v90, %v101
  %v119 = vadd.f32 %v91, %v106
  %v120 = vadd.f32 %v92, %v111
  %v121 = vadd.f32 %v93, %v116
  %v122 = vld [vmem:[%s1] sm:$0xff]
  %v123 = vld [vmem:[%s1 + $0x8] sm:$0xff]
  %v124 = vld [vmem:[%s1 + $0x10] sm:$0xff]
  %v125 = vld [vmem:[%s1 + $0x18] sm:$0xff]
  %v126 = vld [vmem:[%s1 + $0x20] sm:$0xff]
  %v127 = vld [vmem:[%s1 + $0x28] sm:$0xff]
  %vm128 = vcmask 31744
  %v130 = vsel %vm128, %v122, 0
  %v133 = vsel %vm128, %v123, 0
  %v136 = vsel %vm128, %v124, 0
  %v139 = vsel %vm128, %v125, 0
  %v142 = vsel %vm128, %v126, 0
  %v145 = vsel %vm128, %v127, 0
  %vm147 = vcmask 1043456
  %v149 = vsel %vm147, %v23, 0
  %151 = vmatprep.subr.mxu0 0.0
  %152 = vmatpush1.msra.mxu0 %v149
  %153 = vmatprep.subr.mxu0 0.0
  %154 = vmatpush1.msra.mxu0 0.0
  %155 = vmatprep.subr.mxu0 0.0
  %156 = vmatpush1.msra.mxu0 0.0
  %157 = vmatprep.subr.mxu0 0.0
  %158 = vmatpush1.msra.mxu0 0.0
  %159 = vmatprep.subr.mxu0 0.0
  %160 = vmatpush1.msra.mxu0 0.0
  %161 = vmatprep.subr.mxu0 0.0
  %162 = vmatpush1.msra.mxu0 0.0
  %163 = vmatprep.subr.mxu0 0.0
  %164 = vmatpush1.msra.mxu0 0.0
  %165 = vmatprep.subr.mxu0 0.0
  %166 = vmatpush1.msra.mxu0 0.0
  %167 = vmatprep.subr.mxu0 0.0
  %168 = vmatpush1.msra.mxu0 0.0
  %169 = vmatprep.subr.mxu0 0.0
  %170 = vmatpush1.msra.mxu0 0.0
  %171 = vmatprep.subr.mxu0 0.0
  %172 = vmatpush1.msra.mxu0 0.0
  %173 = vmatprep.subr.mxu0 0.0
  %174 = vmatpush1.msra.mxu0 0.0
  %175 = vmatprep.subr.mxu0 0.0
  %176 = vmatpush1.msra.mxu0 0.0
  %177 = vmatprep.subr.mxu0 0.0
  %178 = vmatpush1.msra.mxu0 0.0
  %179 = vmatprep.subr.mxu0 0.0
  %180 = vmatpush1.msra.mxu0 0.0
  %181 = vmatprep.subr.mxu0 0.0
  %182 = vmatpush1.msra.mxu0 0.0
  %183 = vmatprep.subr.mxu0 0.0
  %184 = vmatpush1.msra.mxu0 0.0
  %185 = vmatprep.subr.mxu0 0.0
  %186 = vmatpush1.msra.mxu0 0.0
  %187 = vmatprep.subr.mxu0 0.0
  %188 = vmatpush1.msra.mxu0 0.0
  %189 = vmatprep.subr.mxu0 0.0
  %190 = vmatpush1.msra.mxu0 0.0
  %191 = vmatprep.subr.mxu0 0.0
  %192 = vmatpush1.msra.mxu0 0.0
  %193 = vmatprep.subr.mxu0 0.0
  %194 = vmatpush1.msra.mxu0 0.0
  %195 = vmatprep.subr.mxu0 0.0
  %196 = vmatpush1.msra.mxu0 0.0
  %197 = vmatprep.subr.mxu0 0.0
  %198 = vmatpush1.msra.mxu0 0.0
  %199 = vmatprep.subr.mxu0 0.0
  %200 = vmatpush1.msra.mxu0 0.0
  %201 = vmatprep.subr.mxu0 0.0
  %202 = vmatpush1.msra.mxu0 0.0
  %203 = vmatprep.subr.mxu0 0.0
  %204 = vmatpush1.msra.mxu0 0.0
  %205 = vmatprep.subr.mxu0 0.0
  %206 = vmatpush1.msra.mxu0 0.0
  %207 = vmatprep.subr.mxu0 0.0
  %208 = vmatpush1.msra.mxu0 0.0
  %209 = vmatprep.subr.mxu0 0.0
  %210 = vmatpush1.msra.mxu0 0.0
  %211 = vmatprep.subr.mxu0 0.0
  %212 = vmatpush1.msra.mxu0 0.0
  %213 = vmatprep.subr.mxu0 0.0
  %214 = vmatpush1.msra.mxu0 0.0
  %215 = vmatprep.mubr.f32.mxu0 0.0
  %216 = vmatmul.mubr.f32.gmra.mrb[0].mxu0 %v130
  %v217 = vpop.f32.mrb[0].mxu0
  %v218 = vadd.f32 0.0, %v217
  %v219 = vpop.f32.mrb[0].mxu0
  %220 = vmatprep.mubr.f32.mxu0 0.0
  %221 = vmatmul.mubr.f32.gmra.mrb[0].mxu0 %v133
  %v222 = vpop.f32.mrb[0].mxu0
  %v223 = vadd.f32 0.0, %v222
  %v224 = vpop.f32.mrb[0].mxu0
  %225 = vmatprep.mubr.f32.mxu0 0.0
  %226 = vmatmul.mubr.f32.gmra.mrb[0].mxu0 %v136
  %v227 = vpop.f32.mrb[0].mxu0
  %v228 = vadd.f32 0.0, %v227
  %v229 = vpop.f32.mrb[0].mxu0
  %230 = vmatprep.mubr.f32.mxu0 0.0
  %231 = vmatmul.mubr.f32.gmra.mrb[0].mxu0 %v139
  %v232 = vpop.f32.mrb[0].mxu0
  %v233 = vadd.f32 0.0, %v232
  %v234 = vpop.f32.mrb[0].mxu0
  %235 = vmatprep.mubr.f32.mxu0 0.0
  %236 = vmatmul.mubr.f32.gmra.mrb[0].mxu0 %v142
  %v237 = vpop.f32.mrb[0].mxu0
  %v238 = vadd.f32 0.0, %v237
  %v239 = vpop.f32.mrb[0].mxu0
  %240 = vmatprep.mubr.f32.mxu0 0.0
  %241 = vmatmul.mubr.f32.gmra.mrb[0].mxu0 %v145
  %v242 = vpop.f32.mrb[0].mxu0
  %v243 = vadd.f32 0.0, %v242
  %v244 = vpop.f32.mrb[0].mxu0
  %245 = vdwg.mxu0
  %v246 = vadd.f32 %v218, %v118
  %v247 = vadd.f32 %v223, %v119
  %v248 = vadd.f32 %v228, %v120
  %v249 = vmax.f32 %v246, 0.0
  %v250 = vmax.f32 %v247, 0.0
  %v251 = vmax.f32 %v248, 0.0
  %v252 = vld [vmem:[%s3] sm:$0xff]
  %v253 = vld [vmem:[%s3 + $0x8] sm:$0xf]
  %v254 = vld [vmem:[%s5 + $0x60] sm:$0xff]
  %v255 = vld [vmem:[%s5 + $0x68] sm:$0xf]
  %257 = vset.pattern.permute.xlu0 0
  %258 = vperm.xlu0 %257, %v254
  %v259 = vpop.permute.xlu0 %258
  %262 = vset.pattern.permute.xlu0 0
  %263 = vperm.xlu0 %262, %v255
  %v264 = vpop.permute.xlu0 %263
  %vm266 = vcmask 195584
  %v268 = vsel %vm266, %v252, 0
  %v271 = vsel %vm266, %v253, 0
  %273 = vmatprep.subr.mxu0 0.0
  %274 = vmatpush1.msra.mxu0 %v249
  %275 = vmatprep.subr.mxu0 0.0
  %276 = vmatpush1.msra.mxu0 %v250
  %277 = vmatprep.subr.mxu0 0.0
  %278 = vmatpush1.msra.mxu0 %v251
  %279 = vmatprep.subr.mxu0 0.0
  %280 = vmatpush1.msra.mxu0 0.0
  %281 = vmatprep.subr.mxu0 0.0
  %282 = vmatpush1.msra.mxu0 0.0
  %283 = vmatprep.subr.mxu0 0.0
  %284 = vmatpush1.msra.mxu0 0.0
  %285 = vmatprep.subr.mxu0 0.0
  %286 = vmatpush1.msra.mxu0 0.0
  %287 = vmatprep.subr.mxu0 0.0
  %288 = vmatpush1.msra.mxu0 0.0
  %289 = vmatprep.subr.mxu0 0.0
  %290 = vmatpush1.msra.mxu0 0.0
  %291 = vmatprep.subr.mxu0 0.0
  %292 = vmatpush1.msra.mxu0 0.0
  %293 = vmatprep.subr.mxu0 0.0
  %294 = vmatpush1.msra.mxu0 0.0
  %295 = vmatprep.subr.mxu0 0.0
  %296 = vmatpush1.msra.mxu0 0.0
  %297 = vmatprep.subr.mxu0 0.0
  %298 = vmatpush1.msra.mxu0 0.0
  %299 = vmatprep.subr.mxu0 0.0
  %300 = vmatpush1.msra.mxu0 0.0
  %301 = vmatprep.subr.mxu0 0.0
  %302 = vmatpush1.msra.mxu0 0.0
  %303 = vmatprep.subr.mxu0 0.0
  %304 = vmatpush1.msra.mxu0 0.0
  %305 = vmatprep.subr.mxu0 0.0
  %306 = vmatpush1.msra.mxu0 0.0
  %307 = vmatprep.subr.mxu0 0.0
  %308 = vmatpush1.msra.mxu0 0.0
  %309 = vmatprep.subr.mxu0 0.0
  %310 = vmatpush1.msra.mxu0 0.0
  %311 = vmatprep.subr.mxu0 0.0
  %312 = vmatpush1.msra.mxu0 0.0
  %313 = vmatprep.subr.mxu0 0.0
  %314 = vmatpush1.msra.mxu0 0.0
  %315 = vmatprep.subr.mxu0 0.0
  %316 = vmatpush1.msra.mxu0 0.0
  %317 = vmatprep.subr.mxu0 0.0
  %318 = vmatpush1.msra.mxu0 0.0
  %319 = vmatprep.subr.mxu0 0.0
  %320 = vmatpush1.msra.mxu0 0.0
  %321 = vmatprep.subr.mxu0 0.0
  %322 = vmatpush1.msra.mxu0 0.0
  %323 = vmatprep.subr.mxu0 0.0
  %324 = vmatpush1.msra.mxu0 0.0
  %325 = vmatprep.subr.mxu0 0.0
  %326 = vmatpush1.msra.mxu0 0.0
  %327 = vmatprep.subr.mxu0 0.0
  %328 = vmatpush1.msra.mxu0 0.0
  %329 = vmatprep.subr.mxu0 0.0
  %330 = vmatpush1.msra.mxu0 0.0
  %331 = vmatprep.subr.mxu0 0.0
  %332 = vmatpush1.msra.mxu0 0.0
  %333 = vmatprep.subr.mxu0 0.0
  %334 = vmatpush1.msra.mxu0 0.0
  %335 = vmatprep.subr.mxu0 0.0
  %336 = vmatpush1.msra.mxu0 0.0
  %337 = vmatprep.mubr.f32.mxu0 0.0
  %338 = vmatmul.mubr.f32.gmra.mrb[0].mxu0 %v268
  %v339 = vpop.f32.mrb[0].mxu0
  %v340 = vadd.f32 %v259, %v339
  %v341 = vpop.f32.mrb[0].mxu0
  %342 = vmatprep.mubr.f32.mxu0 0.0
  %343 = vmatmul.mubr.f32.gmra.mrb[0].mxu0 %v271
  %v344 = vpop.f32.mrb[0].mxu0
  %v345 = vadd.f32 %v264, %v344
  %v346 = vpop.f32.mrb[0].mxu0
  %347 = vdwg.mxu0
  %v349 = vrot.slane %v340, 1
  %v351 = vmax.f32 %v340, %v349
  %v352 = vrot.slane %v340, 2
  %v354 = vmax.f32 %v351, %v352
  %v355 = vsub.f32 %v340, %v354
  %v356 = vmul.f32 %v355, 1.442695
  %v357 = vpow.pop %v356
  %v359 = vrot.slane %v354, 7
  %v361 = vsub.f32 %v340, %v359
  %v362 = vmul.f32 %v361, 1.442695
  %v363 = vpow.pop %v362
  %v364 = vrot.slane %v354, 6
  %v366 = vsub.f32 %v340, %v364
  %v367 = vmul.f32 %v366, 1.442695
  %v368 = vpow.pop %v367
  %v370 = vrot.slane %v363, 1
  %v372 = vadd.f32 %v357, %v370
  %v374 = vrot.slane %v368, 2
  %v376 = vadd.f32 %v372, %v374
  %v377 = vrcp.pop %v376
  %v378 = vmul.f32 %v376, %v377
  %v379 = vsub.f32 2.0, %v378
  %v380 = vmul.f32 %v377, %v379
  %v381 = vxor.u32 %v345, 2147483648
  %v382 = vmul.f32 %v381, 1.442695
  %v383 = vpow.pop %v382
  %v384 = vadd.f32 %v383, 1.0
  %v385 = vrcp.pop %v384
  %v386 = vmul.f32 1.0, %v385
  %v387 = vld [vmem:[%s5 + $0x70] sm:$0xf]
  %389 = vset.pattern.permute.xlu0 0
  %390 = vperm.xlu0 %389, %v387
  %v391 = vpop.permute.xlu0 %390
  %v393 = vadd.f32 %v233, %v391
  %v394 = vtanh.pop %v393
  %v395 = vld [vmem:[%s5 + $0x78] sm:$0xf]
  %397 = vset.pattern.permute.xlu0 0
  %398 = vperm.xlu0 %397, %v395
  %v399 = vpop.permute.xlu0 %398
  %v401 = vmul.f32 %v399, %v394
  %v402 = vld [vmem:[%s5 + $0x80] sm:$0xf]
  %404 = vset.pattern.permute.xlu0 0
  %405 = vperm.xlu0 %404, %v402
  %v406 = vpop.permute.xlu0 %405
  %v408 = vadd.f32 %v401, %v406
  %v409 = vmul.f32 %v386, %v408
  %v410 = vadd.f32 %v23, %v409
  %v411 = vld [vmem:[%s5 + $0x88] sm:$0xf]
  %413 = vset.pattern.permute.xlu0 0
  %414 = vperm.xlu0 %413, %v411
  %v415 = vpop.permute.xlu0 %414
  %v417 = vadd.f32 %v415, %v23
  %v419 = vrot.slane %v417, 1
  %v421 = vadd.f32 %v417, %v419
  %v422 = vrot.slane %v417, 2
  %v424 = vadd.f32 %v421, %v422
  %v425 = vrot.slane %v417, 3
  %v427 = vadd.f32 %v424, %v425
  %v428 = vmul.f32 %v427, 0.25
  %v429 = vlaneseq
  %v430 = vshrl.u32 %v429, 7
  %v431 = vsub.s32 0, %v430
  %v432 = vrot.slane %v428, %v431
  %v433 = vsub.f32 %v417, %v432
  %v434 = vmul.f32 %v433, %v433
  %v436 = vrot.slane %v434, 1
  %v438 = vadd.f32 %v434, %v436
  %v439 = vrot.slane %v434, 2
  %v441 = vadd.f32 %v438, %v439
  %v442 = vrot.slane %v434, 3
  %v444 = vadd.f32 %v441, %v442
  %v445 = vmul.f32 %v444, 0.25
  %v446 = vadd.f32 %v445, 1e-05
  %v447 = vrsqrt.pop %v446
  %v448 = vlaneseq
  %v449 = vshrl.u32 %v448, 7
  %v450 = vsub.s32 0, %v449
  %v451 = vrot.slane %v447, %v450
  %v452 = vmul.f32 %v433, %v451
  %v453 = vld [vmem:[%s5 + $0x98] sm:$0xf]
  %455 = vset.pattern.permute.xlu0 0
  %456 = vperm.xlu0 %455, %v453
  %v457 = vpop.permute.xlu0 %456
  %v459 = vmul.f32 %v452, %v457
  %v460 = vld [vmem:[%s5 + $0xa0] sm:$0xf]
  %462 = vset.pattern.permute.xlu0 0
  %463 = vperm.xlu0 %462, %v460
  %v464 = vpop.permute.xlu0 %463
  %v466 = vadd.f32 %v459, %v464
  %v467 = vld [vmem:[%s5 + $0x90] sm:$0xf]
  %469 = vset.pattern.permute.xlu0 0
  %470 = vperm.xlu0 %469, %v467
  %v471 = vpop.permute.xlu0 %470
  %v473 = vadd.f32 %v238, %v471
  %v475 = vrot.slane %v473, 1
  %v477 = vadd.f32 %v473, %v475
  %v478 = vrot.slane %v473, 2
  %v480 = vadd.f32 %v477, %v478
  %v481 = vrot.slane %v473, 3
  %v483 = vadd.f32 %v480, %v481
  %v484 = vmul.f32 %v483, 0.25
  %v485 = vlaneseq
  %v486 = vshrl.u32 %v485, 7
  %v487 = vsub.s32 0, %v486
  %v488 = vrot.slane %v484, %v487
  %v489 = vsub.f32 %v473, %v488
  %v490 = vmul.f32 %v489, %v489
  %v492 = vrot.slane %v490, 1
  %v494 = vadd.f32 %v490, %v492
  %v495 = vrot.slane %v490, 2
  %v497 = vadd.f32 %v494, %v495
  %v498 = vrot.slane %v490, 3
  %v500 = vadd.f32 %v497, %v498
  %v501 = vmul.f32 %v500, 0.25
  %v502 = vadd.f32 %v501, 1e-05
  %v503 = vrsqrt.pop %v502
  %v504 = vlaneseq
  %v505 = vshrl.u32 %v504, 7
  %v506 = vsub.s32 0, %v505
  %v507 = vrot.slane %v503, %v506
  %v508 = vmul.f32 %v489, %v507
  %v509 = vld [vmem:[%s5 + $0xa8] sm:$0xf]
  %511 = vset.pattern.permute.xlu0 0
  %512 = vperm.xlu0 %511, %v509
  %v513 = vpop.permute.xlu0 %512
  %v515 = vmul.f32 %v508, %v513
  %v516 = vld [vmem:[%s5 + $0xb0] sm:$0xf]
  %518 = vset.pattern.permute.xlu0 0
  %519 = vperm.xlu0 %518, %v516
  %v520 = vpop.permute.xlu0 %519
  %v522 = vadd.f32 %v515, %v520
  %v523 = vld [vmem:[%s1 + $0x30] sm:$0xff]
  %v524 = vld [vmem:[%s1 + $0x38] sm:$0xf]
  %v526 = vsel %vm128, %v523, 0
  %v529 = vsel %vm128, %v524, 0
  %v532 = vsel %vm147, %v466, 0
  %534 = vmatprep.subr.mxu0 0.0
  %535 = vmatpush1.msra.mxu0 %v532
  %536 = vmatprep.subr.mxu0 0.0
  %537 = vmatpush1.msra.mxu0 0.0
  %538 = vmatprep.subr.mxu0 0.0
  %539 = vmatpush1.msra.mxu0 0.0
  %540 = vmatprep.subr.mxu0 0.0
  %541 = vmatpush1.msra.mxu0 0.0
  %542 = vmatprep.subr.mxu0 0.0
  %543 = vmatpush1.msra.mxu0 0.0
  %544 = vmatprep.subr.mxu0 0.0
  %545 = vmatpush1.msra.mxu0 0.0
  %546 = vmatprep.subr.mxu0 0.0
  %547 = vmatpush1.msra.mxu0 0.0
  %548 = vmatprep.subr.mxu0 0.0
  %549 = vmatpush1.msra.mxu0 0.0
  %550 = vmatprep.subr.mxu0 0.0
  %551 = vmatpush1.msra.mxu0 0.0
  %552 = vmatprep.subr.mxu0 0.0
  %553 = vmatpush1.msra.mxu0 0.0
  %554 = vmatprep.subr.mxu0 0.0
  %555 = vmatpush1.msra.mxu0 0.0
  %556 = vmatprep.subr.mxu0 0.0
  %557 = vmatpush1.msra.mxu0 0.0
  %558 = vmatprep.subr.mxu0 0.0
  %559 = vmatpush1.msra.mxu0 0.0
  %560 = vmatprep.subr.mxu0 0.0
  %561 = vmatpush1.msra.mxu0 0.0
  %562 = vmatprep.subr.mxu0 0.0
  %563 = vmatpush1.msra.mxu0 0.0
  %564 = vmatprep.subr.mxu0 0.0
  %565 = vmatpush1.msra.mxu0 0.0
  %566 = vmatprep.subr.mxu0 0.0
  %567 = vmatpush1.msra.mxu0 0.0
  %568 = vmatprep.subr.mxu0 0.0
  %569 = vmatpush1.msra.mxu0 0.0
  %570 = vmatprep.subr.mxu0 0.0
  %571 = vmatpush1.msra.mxu0 0.0
  %572 = vmatprep.subr.mxu0 0.0
  %573 = vmatpush1.msra.mxu0 0.0
  %574 = vmatprep.subr.mxu0 0.0
  %575 = vmatpush1.msra.mxu0 0.0
  %576 = vmatprep.subr.mxu0 0.0
  %577 = vmatpush1.msra.mxu0 0.0
  %578 = vmatprep.subr.mxu0 0.0
  %579 = vmatpush1.msra.mxu0 0.0
  %580 = vmatprep.subr.mxu0 0.0
  %581 = vmatpush1.msra.mxu0 0.0
  %582 = vmatprep.subr.mxu0 0.0
  %583 = vmatpush1.msra.mxu0 0.0
  %584 = vmatprep.subr.mxu0 0.0
  %585 = vmatpush1.msra.mxu0 0.0
  %586 = vmatprep.subr.mxu0 0.0
  %587 = vmatpush1.msra.mxu0 0.0
  %588 = vmatprep.subr.mxu0 0.0
  %589 = vmatpush1.msra.mxu0 0.0
  %590 = vmatprep.subr.mxu0 0.0
  %591 = vmatpush1.msra.mxu0 0.0
  %592 = vmatprep.subr.mxu0 0.0
  %593 = vmatpush1.msra.mxu0 0.0
  %594 = vmatprep.subr.mxu0 0.0
  %595 = vmatpush1.msra.mxu0 0.0
  %596 = vmatprep.subr.mxu0 0.0
  %597 = vmatpush1.msra.mxu0 0.0
  %598 = vmatprep.mubr.f32.mxu0 0.0
  %599 = vmatmul.mubr.f32.gmra.mrb[0].mxu0 %v526
  %v600 = vpop.f32.mrb[0].mxu0
  %v601 = vadd.f32 0.0, %v600
  %v602 = vpop.f32.mrb[0].mxu0
  %603 = vmatprep.mubr.f32.mxu0 0.0
  %604 = vmatmul.mubr.f32.gmra.mrb[0].mxu0 %v529
  %v605 = vpop.f32.mrb[0].mxu0
  %v606 = vadd.f32 0.0, %v605
  %v607 = vpop.f32.mrb[0].mxu0
  %608 = vdwg.mxu0
  %v609 = vld [vmem:[%s1 + $0x40] sm:$0xff]
  %v610 = vld [vmem:[%s1 + $0x48] sm:$0xf]
  %v612 = vsel %vm128, %v609, 0
  %v615 = vsel %vm128, %v610, 0
  %v618 = vsel %vm147, %v522, 0
  %620 = vmatprep.subr.mxu0 0.0
  %621 = vmatpush1.msra.mxu0 %v618
  %622 = vmatprep.subr.mxu0 0.0
  %623 = vmatpush1.msra.mxu0 0.0
  %624 = vmatprep.subr.mxu0 0.0
  %625 = vmatpush1.msra.mxu0 0.0
  %626 = vmatprep.subr.mxu0 0.0
  %627 = vmatpush1.msra.mxu0 0.0
  %628 = vmatprep.subr.mxu0 0.0
  %629 = vmatpush1.msra.mxu0 0.0
  %630 = vmatprep.subr.mxu0 0.0
  %631 = vmatpush1.msra.mxu0 0.0
  %632 = vmatprep.subr.mxu0 0.0
  %633 = vmatpush1.msra.mxu0 0.0
  %634 = vmatprep.subr.mxu0 0.0
  %635 = vmatpush1.msra.mxu0 0.0
  %636 = vmatprep.subr.mxu0 0.0
  %637 = vmatpush1.msra.mxu0 0.0
  %638 = vmatprep.subr.mxu0 0.0
  %639 = vmatpush1.msra.mxu0 0.0
  %640 = vmatprep.subr.mxu0 0.0
  %641 = vmatpush1.msra.mxu0 0.0
  %642 = vmatprep.subr.mxu0 0.0
  %643 = vmatpush1.msra.mxu0 0.0
  %644 = vmatprep.subr.mxu0 0.0
  %645 = vmatpush1.msra.mxu0 0.0
  %646 = vmatprep.subr.mxu0 0.0
  %647 = vmatpush1.msra.mxu0 0.0
  %648 = vmatprep.subr.mxu0 0.0
  %649 = vmatpush1.msra.mxu0 0.0
  %650 = vmatprep.subr.mxu0 0.0
  %651 = vmatpush1.msra.mxu0 0.0
  %652 = vmatprep.subr.mxu0 0.0
  %653 = vmatpush1.msra.mxu0 0.0
  %654 = vmatprep.subr.mxu0 0.0
  %655 = vmatpush1.msra.mxu0 0.0
  %656 = vmatprep.subr.mxu0 0.0
  %657 = vmatpush1.msra.mxu0 0.0
  %658 = vmatprep.subr.mxu0 0.0
  %659 = vmatpush1.msra.mxu0 0.0
  %660 = vmatprep.subr.mxu0 0.0
  %661 = vmatpush1.msra.mxu0 0.0
  %662 = vmatprep.subr.mxu0 0.0
  %663 = vmatpush1.msra.mxu0 0.0
  %664 = vmatprep.subr.mxu0 0.0
  %665 = vmatpush1.msra.mxu0 0.0
  %666 = vmatprep.subr.mxu0 0.0
  %667 = vmatpush1.msra.mxu0 0.0
  %668 = vmatprep.subr.mxu0 0.0
  %669 = vmatpush1.msra.mxu0 0.0
  %670 = vmatprep.subr.mxu0 0.0
  %671 = vmatpush1.msra.mxu0 0.0
  %672 = vmatprep.subr.mxu0 0.0
  %673 = vmatpush1.msra.mxu0 0.0
  %674 = vmatprep.subr.mxu0 0.0
  %675 = vmatpush1.msra.mxu0 0.0
  %676 = vmatprep.subr.mxu0 0.0
  %677 = vmatpush1.msra.mxu0 0.0
  %678 = vmatprep.subr.mxu0 0.0
  %679 = vmatpush1.msra.mxu0 0.0
  %680 = vmatprep.subr.mxu0 0.0
  %681 = vmatpush1.msra.mxu0 0.0
  %682 = vmatprep.subr.mxu0 0.0
  %683 = vmatpush1.msra.mxu0 0.0
  %684 = vmatprep.mubr.f32.mxu0 0.0
  %685 = vmatmul.mubr.f32.gmra.mrb[0].mxu0 %v612
  %v686 = vpop.f32.mrb[0].mxu0
  %v687 = vadd.f32 0.0, %v686
  %v688 = vpop.f32.mrb[0].mxu0
  %689 = vmatprep.mubr.f32.mxu0 0.0
  %690 = vmatmul.mubr.f32.gmra.mrb[0].mxu0 %v615
  %v691 = vpop.f32.mrb[0].mxu0
  %v692 = vadd.f32 0.0, %v691
  %v693 = vpop.f32.mrb[0].mxu0
  %694 = vdwg.mxu0
  %v695 = vld [vmem:[%s5 + $0xb8] sm:$0xff]
  %697 = vset.pattern.permute.xlu0 0
  %698 = vperm.xlu0 %697, %v695
  %v699 = vpop.permute.xlu0 %698
  %v701 = vadd.f32 %v601, %v699
  %v702 = vmax.f32 %v701, 0.0
  %v703 = vld [vmem:[%s5 + $0xc0] sm:$0xff]
  %705 = vset.pattern.permute.xlu0 0
  %706 = vperm.xlu0 %705, %v703
  %v707 = vpop.permute.xlu0 %706
  %v709 = vadd.f32 %v687, %v707
  %v710 = vmax.f32 %v709, 0.0
  %v711 = vadd.f32 %v606, %v692
  %v712 = vld [vmem:[%s4] sm:$0xf]
  %vm713 = vcmask 130048
  %v715 = vsel %vm713, %v712, 0
  %717 = vmatprep.subr.mxu0 0.0
  %718 = vmatpush1.msra.mxu0 %v702
  %719 = vmatprep.subr.mxu0 0.0
  %720 = vmatpush1.msra.mxu0 %v710
  %721 = vmatprep.subr.mxu0 0.0
  %722 = vmatpush1.msra.mxu0 0.0
  %723 = vmatprep.subr.mxu0 0.0
  %724 = vmatpush1.msra.mxu0 0.0
  %725 = vmatprep.subr.mxu0 0.0
  %726 = vmatpush1.msra.mxu0 0.0
  %727 = vmatprep.subr.mxu0 0.0
  %728 = vmatpush1.msra.mxu0 0.0
  %729 = vmatprep.subr.mxu0 0.0
  %730 = vmatpush1.msra.mxu0 0.0
  %731 = vmatprep.subr.mxu0 0.0
  %732 = vmatpush1.msra.mxu0 0.0
  %733 = vmatprep.subr.mxu0 0.0
  %734 = vmatpush1.msra.mxu0 0.0
  %735 = vmatprep.subr.mxu0 0.0
  %736 = vmatpush1.msra.mxu0 0.0
  %737 = vmatprep.subr.mxu0 0.0
  %738 = vmatpush1.msra.mxu0 0.0
  %739 = vmatprep.subr.mxu0 0.0
  %740 = vmatpush1.msra.mxu0 0.0
  %741 = vmatprep.subr.mxu0 0.0
  %742 = vmatpush1.msra.mxu0 0.0
  %743 = vmatprep.subr.mxu0 0.0
  %744 = vmatpush1.msra.mxu0 0.0
  %745 = vmatprep.subr.mxu0 0.0
  %746 = vmatpush1.msra.mxu0 0.0
  %747 = vmatprep.subr.mxu0 0.0
  %748 = vmatpush1.msra.mxu0 0.0
  %749 = vmatprep.subr.mxu0 0.0
  %750 = vmatpush1.msra.mxu0 0.0
  %751 = vmatprep.subr.mxu0 0.0
  %752 = vmatpush1.msra.mxu0 0.0
  %753 = vmatprep.subr.mxu0 0.0
  %754 = vmatpush1.msra.mxu0 0.0
  %755 = vmatprep.subr.mxu0 0.0
  %756 = vmatpush1.msra.mxu0 0.0
  %757 = vmatprep.subr.mxu0 0.0
  %758 = vmatpush1.msra.mxu0 0.0
  %759 = vmatprep.subr.mxu0 0.0
  %760 = vmatpush1.msra.mxu0 0.0
  %761 = vmatprep.subr.mxu0 0.0
  %762 = vmatpush1.msra.mxu0 0.0
  %763 = vmatprep.subr.mxu0 0.0
  %764 = vmatpush1.msra.mxu0 0.0
  %765 = vmatprep.subr.mxu0 0.0
  %766 = vmatpush1.msra.mxu0 0.0
  %767 = vmatprep.subr.mxu0 0.0
  %768 = vmatpush1.msra.mxu0 0.0
  %769 = vmatprep.subr.mxu0 0.0
  %770 = vmatpush1.msra.mxu0 0.0
  %771 = vmatprep.subr.mxu0 0.0
  %772 = vmatpush1.msra.mxu0 0.0
  %773 = vmatprep.subr.mxu0 0.0
  %774 = vmatpush1.msra.mxu0 0.0
  %775 = vmatprep.subr.mxu0 0.0
  %776 = vmatpush1.msra.mxu0 0.0
  %777 = vmatprep.subr.mxu0 0.0
  %778 = vmatpush1.msra.mxu0 0.0
  %779 = vmatprep.subr.mxu0 0.0
  %780 = vmatpush1.msra.mxu0 0.0
  %781 = vmatprep.mubr.f32.mxu0 0.0
  %782 = vmatmul.mubr.f32.gmra.mrb[0].mxu0 %v715
  %v783 = vpop.f32.mrb[0].mxu0
  %v784 = vadd.f32 0.0, %v783
  %v785 = vpop.f32.mrb[0].mxu0
  %786 = vdwg.mxu0
  %v787 = vadd.f32 %v711, %v784
  %v788 = vld [vmem:[%s5 + $0xc8] sm:$0xf]
  %790 = vset.pattern.permute.xlu0 0
  %791 = vperm.xlu0 %790, %v788
  %v792 = vpop.permute.xlu0 %791
  %v794 = vadd.f32 %v787, %v792
  %v795 = vtanh.pop %v794
  %v796 = vmax.f32 %v121, 0.0
  %v797 = vld [vmem:[%s5 + $0xd0] sm:$0xff]
  %799 = vset.pattern.permute.xlu0 0
  %800 = vperm.xlu0 %799, %v797
  %v801 = vpop.permute.xlu0 %800
  %v803 = vadd.f32 %v243, %v801
  %v804 = vld [vmem:[%s1 + $0x50] sm:$0xff]
  %v806 = vsel %vm128, %v804, 0
  %v809 = vsel %vm147, %v796, 0
  %811 = vmatprep.subr.mxu0 0.0
  %812 = vmatpush1.msra.mxu0 %v809
  %813 = vmatprep.subr.mxu0 0.0
  %814 = vmatpush1.msra.mxu0 0.0
  %815 = vmatprep.subr.mxu0 0.0
  %816 = vmatpush1.msra.mxu0 0.0
  %817 = vmatprep.subr.mxu0 0.0
  %818 = vmatpush1.msra.mxu0 0.0
  %819 = vmatprep.subr.mxu0 0.0
  %820 = vmatpush1.msra.mxu0 0.0
  %821 = vmatprep.subr.mxu0 0.0
  %822 = vmatpush1.msra.mxu0 0.0
  %823 = vmatprep.subr.mxu0 0.0
  %824 = vmatpush1.msra.mxu0 0.0
  %825 = vmatprep.subr.mxu0 0.0
  %826 = vmatpush1.msra.mxu0 0.0
  %827 = vmatprep.subr.mxu0 0.0
  %828 = vmatpush1.msra.mxu0 0.0
  %829 = vmatprep.subr.mxu0 0.0
  %830 = vmatpush1.msra.mxu0 0.0
  %831 = vmatprep.subr.mxu0 0.0
  %832 = vmatpush1.msra.mxu0 0.0
  %833 = vmatprep.subr.mxu0 0.0
  %834 = vmatpush1.msra.mxu0 0.0
  %835 = vmatprep.subr.mxu0 0.0
  %836 = vmatpush1.msra.mxu0 0.0
  %837 = vmatprep.subr.mxu0 0.0
  %838 = vmatpush1.msra.mxu0 0.0
  %839 = vmatprep.subr.mxu0 0.0
  %840 = vmatpush1.msra.mxu0 0.0
  %841 = vmatprep.subr.mxu0 0.0
  %842 = vmatpush1.msra.mxu0 0.0
  %843 = vmatprep.subr.mxu0 0.0
  %844 = vmatpush1.msra.mxu0 0.0
  %845 = vmatprep.subr.mxu0 0.0
  %846 = vmatpush1.msra.mxu0 0.0
  %847 = vmatprep.subr.mxu0 0.0
  %848 = vmatpush1.msra.mxu0 0.0
  %849 = vmatprep.subr.mxu0 0.0
  %850 = vmatpush1.msra.mxu0 0.0
  %851 = vmatprep.subr.mxu0 0.0
  %852 = vmatpush1.msra.mxu0 0.0
  %853 = vmatprep.subr.mxu0 0.0
  %854 = vmatpush1.msra.mxu0 0.0
  %855 = vmatprep.subr.mxu0 0.0
  %856 = vmatpush1.msra.mxu0 0.0
  %857 = vmatprep.subr.mxu0 0.0
  %858 = vmatpush1.msra.mxu0 0.0
  %859 = vmatprep.subr.mxu0 0.0
  %860 = vmatpush1.msra.mxu0 0.0
  %861 = vmatprep.subr.mxu0 0.0
  %862 = vmatpush1.msra.mxu0 0.0
  %863 = vmatprep.subr.mxu0 0.0
  %864 = vmatpush1.msra.mxu0 0.0
  %865 = vmatprep.subr.mxu0 0.0
  %866 = vmatpush1.msra.mxu0 0.0
  %867 = vmatprep.subr.mxu0 0.0
  %868 = vmatpush1.msra.mxu0 0.0
  %869 = vmatprep.subr.mxu0 0.0
  %870 = vmatpush1.msra.mxu0 0.0
  %871 = vmatprep.subr.mxu0 0.0
  %872 = vmatpush1.msra.mxu0 0.0
  %873 = vmatprep.subr.mxu0 0.0
  %874 = vmatpush1.msra.mxu0 0.0
  %875 = vmatprep.mubr.f32.mxu0 0.0
  %876 = vmatmul.mubr.f32.gmra.mrb[0].mxu0 %v806
  %v877 = vpop.f32.mrb[0].mxu0
  %v878 = vadd.f32 0.0, %v877
  %v879 = vpop.f32.mrb[0].mxu0
  %880 = vdwg.mxu0
  %v881 = vadd.f32 %v803, %v878
  %v882 = vmax.f32 %v881, 0.0
  %v883 = vld [vmem:[%s2] sm:$0xff]
  %v884 = vld [vmem:[%s5 + $0xd8] sm:$0xff]
  %886 = vset.pattern.permute.xlu0 0
  %887 = vperm.xlu0 %886, %v884
  %v888 = vpop.permute.xlu0 %887
  %vm890 = vcmask 64512
  %v892 = vsel %vm890, %v883, 0
  %894 = vmatprep.subr.mxu0 0.0
  %895 = vmatpush1.msra.mxu0 %v882
  %896 = vmatprep.subr.mxu0 0.0
  %897 = vmatpush1.msra.mxu0 0.0
  %898 = vmatprep.subr.mxu0 0.0
  %899 = vmatpush1.msra.mxu0 0.0
  %900 = vmatprep.subr.mxu0 0.0
  %901 = vmatpush1.msra.mxu0 0.0
  %902 = vmatprep.subr.mxu0 0.0
  %903 = vmatpush1.msra.mxu0 0.0
  %904 = vmatprep.subr.mxu0 0.0
  %905 = vmatpush1.msra.mxu0 0.0
  %906 = vmatprep.subr.mxu0 0.0
  %907 = vmatpush1.msra.mxu0 0.0
  %908 = vmatprep.subr.mxu0 0.0
  %909 = vmatpush1.msra.mxu0 0.0
  %910 = vmatprep.subr.mxu0 0.0
  %911 = vmatpush1.msra.mxu0 0.0
  %912 = vmatprep.subr.mxu0 0.0
  %913 = vmatpush1.msra.mxu0 0.0
  %914 = vmatprep.subr.mxu0 0.0
  %915 = vmatpush1.msra.mxu0 0.0
  %916 = vmatprep.subr.mxu0 0.0
  %917 = vmatpush1.msra.mxu0 0.0
  %918 = vmatprep.subr.mxu0 0.0
  %919 = vmatpush1.msra.mxu0 0.0
  %920 = vmatprep.subr.mxu0 0.0
  %921 = vmatpush1.msra.mxu0 0.0
  %922 = vmatprep.subr.mxu0 0.0
  %923 = vmatpush1.msra.mxu0 0.0
  %924 = vmatprep.subr.mxu0 0.0
  %925 = vmatpush1.msra.mxu0 0.0
  %926 = vmatprep.subr.mxu0 0.0
  %927 = vmatpush1.msra.mxu0 0.0
  %928 = vmatprep.subr.mxu0 0.0
  %929 = vmatpush1.msra.mxu0 0.0
  %930 = vmatprep.subr.mxu0 0.0
  %931 = vmatpush1.msra.mxu0 0.0
  %932 = vmatprep.subr.mxu0 0.0
  %933 = vmatpush1.msra.mxu0 0.0
  %934 = vmatprep.subr.mxu0 0.0
  %935 = vmatpush1.msra.mxu0 0.0
  %936 = vmatprep.subr.mxu0 0.0
  %937 = vmatpush1.msra.mxu0 0.0
  %938 = vmatprep.subr.mxu0 0.0
  %939 = vmatpush1.msra.mxu0 0.0
  %940 = vmatprep.subr.mxu0 0.0
  %941 = vmatpush1.msra.mxu0 0.0
  %942 = vmatprep.subr.mxu0 0.0
  %943 = vmatpush1.msra.mxu0 0.0
  %944 = vmatprep.subr.mxu0 0.0
  %945 = vmatpush1.msra.mxu0 0.0
  %946 = vmatprep.subr.mxu0 0.0
  %947 = vmatpush1.msra.mxu0 0.0
  %948 = vmatprep.subr.mxu0 0.0
  %949 = vmatpush1.msra.mxu0 0.0
  %950 = vmatprep.subr.mxu0 0.0
  %951 = vmatpush1.msra.mxu0 0.0
  %952 = vmatprep.subr.mxu0 0.0
  %953 = vmatpush1.msra.mxu0 0.0
  %954 = vmatprep.subr.mxu0 0.0
  %955 = vmatpush1.msra.mxu0 0.0
  %956 = vmatprep.subr.mxu0 0.0
  %957 = vmatpush1.msra.mxu0 0.0
  %958 = vmatprep.mubr.f32.mxu0 0.0
  %959 = vmatmul.mubr.f32.gmra.mrb[0].mxu0 %v892
  %v960 = vpop.f32.mrb[0].mxu0
  %v961 = vadd.f32 %v888, %v960
  %v962 = vpop.f32.mrb[0].mxu0
  %963 = vdwg.mxu0
  %v964 = vmax.f32 %v961, 0.0
  %v965 = vld [vmem:[%s2 + $0x8] sm:$0xf]
  %v966 = vld [vmem:[%s5 + $0xe0] sm:$0xf]
  %968 = vset.pattern.permute.xlu0 0
  %969 = vperm.xlu0 %968, %v966
  %v970 = vpop.permute.xlu0 %969
  %v973 = vsel %vm890, %v965, 0
  %975 = vmatprep.subr.mxu0 0.0
  %976 = vmatpush1.msra.mxu0 %v964
  %977 = vmatprep.subr.mxu0 0.0
  %978 = vmatpush1.msra.mxu0 0.0
  %979 = vmatprep.subr.mxu0 0.0
  %980 = vmatpush1.msra.mxu0 0.0
  %981 = vmatprep.subr.mxu0 0.0
  %982 = vmatpush1.msra.mxu0 0.0
  %983 = vmatprep.subr.mxu0 0.0
  %984 = vmatpush1.msra.mxu0 0.0
  %985 = vmatprep.subr.mxu0 0.0
  %986 = vmatpush1.msra.mxu0 0.0
  %987 = vmatprep.subr.mxu0 0.0
  %988 = vmatpush1.msra.mxu0 0.0
  %989 = vmatprep.subr.mxu0 0.0
  %990 = vmatpush1.msra.mxu0 0.0
  %991 = vmatprep.subr.mxu0 0.0
  %992 = vmatpush1.msra.mxu0 0.0
  %993 = vmatprep.subr.mxu0 0.0
  %994 = vmatpush1.msra.mxu0 0.0
  %995 = vmatprep.subr.mxu0 0.0
  %996 = vmatpush1.msra.mxu0 0.0
  %997 = vmatprep.subr.mxu0 0.0
  %998 = vmatpush1.msra.mxu0 0.0
  %999 = vmatprep.subr.mxu0 0.0
  %1000 = vmatpush1.msra.mxu0 0.0
  %1001 = vmatprep.subr.mxu0 0.0
  %1002 = vmatpush1.msra.mxu0 0.0
  %1003 = vmatprep.subr.mxu0 0.0
  %1004 = vmatpush1.msra.mxu0 0.0
  %1005 = vmatprep.subr.mxu0 0.0
  %1006 = vmatpush1.msra.mxu0 0.0
  %1007 = vmatprep.subr.mxu0 0.0
  %1008 = vmatpush1.msra.mxu0 0.0
  %1009 = vmatprep.subr.mxu0 0.0
  %1010 = vmatpush1.msra.mxu0 0.0
  %1011 = vmatprep.subr.mxu0 0.0
  %1012 = vmatpush1.msra.mxu0 0.0
  %1013 = vmatprep.subr.mxu0 0.0
  %1014 = vmatpush1.msra.mxu0 0.0
  %1015 = vmatprep.subr.mxu0 0.0
  %1016 = vmatpush1.msra.mxu0 0.0
  %1017 = vmatprep.subr.mxu0 0.0
  %1018 = vmatpush1.msra.mxu0 0.0
  %1019 = vmatprep.subr.mxu0 0.0
  %1020 = vmatpush1.msra.mxu0 0.0
  %1021 = vmatprep.subr.mxu0 0.0
  %1022 = vmatpush1.msra.mxu0 0.0
  %1023 = vmatprep.subr.mxu0 0.0
  %1024 = vmatpush1.msra.mxu0 0.0
  %1025 = vmatprep.subr.mxu0 0.0
  %1026 = vmatpush1.msra.mxu0 0.0
  %1027 = vmatprep.subr.mxu0 0.0
  %1028 = vmatpush1.msra.mxu0 0.0
  %1029 = vmatprep.subr.mxu0 0.0
  %1030 = vmatpush1.msra.mxu0 0.0
  %1031 = vmatprep.subr.mxu0 0.0
  %1032 = vmatpush1.msra.mxu0 0.0
  %1033 = vmatprep.subr.mxu0 0.0
  %1034 = vmatpush1.msra.mxu0 0.0
  %1035 = vmatprep.subr.mxu0 0.0
  %1036 = vmatpush1.msra.mxu0 0.0
  %1037 = vmatprep.subr.mxu0 0.0
  %1038 = vmatpush1.msra.mxu0 0.0
  %1039 = vmatprep.mubr.f32.mxu0 0.0
  %1040 = vmatmul.mubr.f32.gmra.mrb[0].mxu0 %v973
  %v1041 = vpop.f32.mrb[0].mxu0
  %v1042 = vadd.f32 %v970, %v1041
  %v1043 = vpop.f32.mrb[0].mxu0
  %1044 = vdwg.mxu0
  %v1045 = vtanh.pop %v1042
  %v1046 = vld [vmem:[%s5 + $0xe8] sm:$0x1]
  %s1048 = vtos %v1046
  %v1049 = vstv %s1048
  %v1051 = vmul.f32 %v1049, %v23
  %v1052 = vld [vmem:[%s5 + $0xf0] sm:$0x1]
  %s1054 = vtos %v1052
  %v1055 = vstv %s1054
  %v1057 = vmul.f32 %v1055, %v1045
  %v1058 = vadd.f32 %v1051, %v1057
  %v1059 = vlaneseq
  %v1060 = vshrl.u32 %v1059, 7
  %v1061 = vsub.s32 0, %v1060
  %v1062 = vrot.slane %v357, %v1061
  %v1063 = vmul.f32 %v1062, %v410
  %v1064 = vlaneseq
  %v1065 = vshrl.u32 %v1064, 7
  %v1066 = vsub.s32 1, %v1065
  %v1067 = vrot.slane %v363, %v1066
  %v1068 = vmul.f32 %v1067, %v795
  %v1069 = vadd.f32 %v1063, %v1068
  %v1070 = vlaneseq
  %v1071 = vshrl.u32 %v1070, 7
  %v1072 = vsub.s32 2, %v1071
  %v1073 = vrot.slane %v368, %v1072
  %v1074 = vmul.f32 %v1073, %v1058
  %v1075 = vadd.f32 %v1069, %v1074
  %v1076 = vlaneseq
  %v1077 = vshrl.u32 %v1076, 7
  %v1078 = vsub.s32 0, %v1077
  %v1079 = vrot.slane %v380, %v1078
  %v1080 = vmul.f32 %v1075, %v1079
  %1081 = vst [vmem:[%s6] sm:$0xf] %v1080
  // Predicated region
  $region26: #{adaptive_threshold_coupler.1} parent=0 // pred_check
    _
  $region27: #{adaptive_threshold_coupler.1} parent=0 // pred_check_branch
    %1083 = sbr.rel (0) target = $region29
  $region28: #{adaptive_threshold_coupler.1} parent=0 // pred_region
    _
  $region29: #{adaptive_threshold_coupler.1} parent=0 // pred_fallthru
    _
  // Predicated region
  $region30: #{adaptive_threshold_coupler.1} parent=0 // pred_check
    _
  $region31: #{adaptive_threshold_coupler.1} parent=0 // pred_check_branch
    %1085 = sbr.rel (0) target = $region33
  $region32: #{adaptive_threshold_coupler.1} parent=0 // pred_region
    _
  $region33: #{adaptive_threshold_coupler.1} parent=0 // pred_fallthru
    _

</llo_original>
